<compile_context>
chip_gen: v7x
topology: tpu7x:2x2x1
jax: 0.10.0
libtpu: 0.0.40
codegen_flags: <defaults>
</compile_context>

<pallas_src>
import functools

import jax
import jax.numpy as jnp
from jax.experimental import pallas as pl
from jax.experimental.pallas import tpu as pltpu  # noqa: F401  (TPU backend)

NUM_CONV_LAYERS = 4
NUM_FILTERS = 8
LANE_W = 64          # lane width of the packed weight buffer (max param width)


# -----------------------------------------------------------------------------
# Fused Pallas kernel: encoder convs + (identity) pool + trunk MLP + head
# -----------------------------------------------------------------------------

def _actor_fused_kernel(layout, action_dim, log_std_min, log_std_max,
                        x_ref, oth_ref, w_ref, out_ref):
    def wview(name):
        off, (r, c) = layout[name]            # static python ints -> free slices
        return w_ref[off:off + r, 0:c]

    # ---- Encoder -----------------------------------------------------------
    # Layer 0: the wrapper already packed the 4 conv taps into lanes, so the
    # whole 2x2/s2 conv is ONE matmul: (64*Np, 4*C_in) @ (4*C_in, F).
    h = x_ref[...]
    h = jnp.maximum(
        jnp.dot(h, wview("cw0"), preferred_element_type=jnp.float32) + wview("cb0"),
        0.0)

    # Layers 1..3: rows are in reverse-Morton / batch-minor order, so tap t of
    # the next layer is the contiguous row block [t*m, (t+1)*m).  Accumulating
    # 4 tap matmuls is mathematically identical to lane-concat + one matmul,
    # without any in-kernel relayout.  (On v7x an MRB/VMEM-scratch accumulator
    # would shave the 3 pops+adds; irrelevant at these sizes.)
    for i in range(1, NUM_CONV_LAYERS):
        w = wview(f"cw{i}")                                   # (4*F_in, F)
        m = h.shape[0] // 4
        f_in = h.shape[1]
        acc = jnp.dot(h[0:m, :], w[0:f_in, :], preferred_element_type=jnp.float32)
        for t in range(1, 4):
            acc = acc + jnp.dot(h[t * m:(t + 1) * m, :],
                                w[t * f_in:(t + 1) * f_in, :],
                                preferred_element_type=jnp.float32)
        h = jnp.maximum(acc + wview(f"cb{i}"), 0.0)

    # Spatial size is 1x1 after 4 stride-2 convs on 16x16, so these features
    # ARE the adaptive_avg_pool2d((1,1)) output: (Np, num_filters), batch order.
    feat = h

    # ---- Trunk MLP (concat([feat, others]) @ W1 done as a split matmul). ----
    z = (jnp.dot(feat, wview("w1f"), preferred_element_type=jnp.float32)
         + jnp.dot(oth_ref[...], wview("w1o"), preferred_element_type=jnp.float32)
         + wview("b1"))
    z = jnp.maximum(z, 0.0)
    z = jnp.maximum(
        jnp.dot(z, wview("w2"), preferred_element_type=jnp.float32) + wview("b2"),
        0.0)

    # Head: one (32, 2A) matmul; lanes [0,A) = mu, lanes [A,2A) = log_std.
    raw = jnp.dot(z, wview("w3"), preferred_element_type=jnp.float32) + wview("b3")
    ls = jnp.tanh(raw)
    ls = log_std_min + 0.5 * (log_std_max - log_std_min) * (ls + 1.0)
    lane = jax.lax.broadcasted_iota(jnp.int32, raw.shape, 1)
    out_ref[...] = jnp.where(lane < action_dim, raw, jnp.exp(ls))


# -----------------------------------------------------------------------------
# Layout plumbing (plain JAX, one fused pad+transpose):
# reverse-Morton / batch-minor rows with the FIRST layer's taps in lanes.
# -----------------------------------------------------------------------------

def _to_tap_lane_rows(obs_nchw, num_layers):
    """(N, C, H, W) -> ((H/2)*(W/2)*N, 4*C).

    Row bits (outer->inner): y1,x1,y2,x2,...,y_{k-1},x_{k-1}, n.
    Lane index: (y0*2 + x0)*C + c  (tap-major, channel-minor).
    """
    N, C, H, W = obs_nchw.shape
    k = num_layers
    if H != (1 << k) or W != (1 << k):
        raise ValueError(f"expected {1 << k}x{1 << k} spatial input, got {H}x{W}")
    x = obs_nchw.reshape((N, C) + (2,) * (2 * k))
    # dims: 0=N, 1=C, 2+(k-1-j)=y_j, 2+k+(k-1-j)=x_j  (y_0/x_0 = LSBs)
    perm = []
    for j in range(1, k):
        perm.append(2 + (k - 1 - j))          # y_j
        perm.append(2 + k + (k - 1 - j))      # x_j
    perm += [0, 2 + (k - 1), 2 + 2 * k - 1, 1]  # N, y_0, x_0, C
    x = jnp.transpose(x, perm)
    return x.reshape((H // 2) * (W // 2) * N, 4 * C)


# -----------------------------------------------------------------------------
# Forward wrapper (single pallas_call, 3 input DMAs, 1 output DMA)
# -----------------------------------------------------------------------------

def actor_forward(wbuf, layout, obs_nchw, others, log_std_bounds=(-10.0, 2.0)):
    N = obs_nchw.shape[0]
    action_dim = layout["w3"][1][1] // 2
    Np = ((N + 7) // 8) * 8                   # pad batch so every slice is aligned
    if Np != N:
        obs_nchw = jnp.pad(obs_nchw, ((0, Np - N), (0, 0), (0, 0), (0, 0)))
        others = jnp.pad(others, ((0, Np - N), (0, 0)))

    x = _to_tap_lane_rows(obs_nchw.astype(jnp.float32), NUM_CONV_LAYERS)
    others = others.astype(jnp.float32)

    def full_spec(shape):
        nd = len(shape)
        return pl.BlockSpec(shape, lambda *_: (0,) * nd)

    kernel = functools.partial(_actor_fused_kernel, layout, action_dim,
                               float(log_std_bounds[0]), float(log_std_bounds[1]))
    out = pl.pallas_call(
        kernel,
        out_shape=jax.ShapeDtypeStruct((Np, 2 * action_dim), jnp.float32),
        in_specs=[full_spec(x.shape), full_spec(others.shape), full_spec(wbuf.shape)],
        out_specs=full_spec((Np, 2 * action_dim)),
    )(x, others, wbuf)

    # (mu, std) of the SquashedNormal; consumer could equally take the padded
    # fused (Np, 2A) buffer directly to save these slices.
    return out[:N, :action_dim], out[:N, action_dim:]


# -----------------------------------------------------------------------------
# Deterministic parameter init (synthetic; shapes match the PyTorch module)
# and ONE-TIME packing of every weight/bias into a single flat buffer.
# -----------------------------------------------------------------------------

def init_params(key, obs_channels, action_dim, num_filters=NUM_FILTERS,
                feature_dim=8):
    keys = jax.random.split(key, 16)
    k = iter(keys)

    def nrm(kk, shape, scale=0.1):
        return (scale * jax.random.normal(kk, shape)).astype(jnp.float32)

    convs = []
    c_in = obs_channels
    for _ in range(NUM_CONV_LAYERS):
        w = nrm(next(k), (num_filters, c_in, 2, 2))           # PyTorch OIHW
        b = nrm(next(k), (num_filters,), scale=0.01)
        convs.append((w, b))
        c_in = num_filters

    trunk = {
        "w1": nrm(next(k), (feature_dim + 4, 64)),            # (in, out) layout
        "b1": nrm(next(k), (64,), scale=0.01),
        "w2": nrm(next(k), (64, 32)),
        "b2": nrm(next(k), (32,), scale=0.01),
        "w3": nrm(next(k), (32, 2 * action_dim)),
        "b3": nrm(next(k), (2 * action_dim,), scale=0.01),
    }
    return {"convs": convs, "trunk": trunk}


def pack_params(params):
    """Pack all weights/biases into ONE (R, LANE_W) f32 buffer (single DMA).

    Returns (wbuf, layout) with layout[name] = (row_offset, (rows, cols)),
    every row_offset a multiple of 8 so in-kernel slices are sublane-aligned.
    Conv weights are packed (kh, kw, c_in, f) -> (4*c_in, f): row = (kh*2+kw)*c_in + c.
    """
    feature_dim = params["convs"][-1][0].shape[0]             # encoder output dim
    entries = []
    for i, (w, b) in enumerate(params["convs"]):
        f, c_in = w.shape[0], w.shape[1]
        wp = jnp.transpose(w, (2, 3, 1, 0)).reshape(4 * c_in, f)
        entries.append((f"cw{i}", wp))
        entries.append((f"cb{i}", b.reshape(1, f)))
    tr = params["trunk"]
    entries += [
        ("w1f", tr["w1"][:feature_dim, :]),
        ("w1o", tr["w1"][feature_dim:, :]),
        ("b1", tr["b1"].reshape(1, -1)),
        ("w2", tr["w2"]),
        ("b2", tr["b2"].reshape(1, -1)),
        ("w3", tr["w3"]),
        ("b3", tr["b3"].reshape(1, -1)),
    ]

    layout = {}
    blocks = []
    off = 0
    for name, a in entries:
        a = jnp.asarray(a, jnp.float32)
        r, c = a.shape
        assert c <= LANE_W
        layout[name] = (off, (r, c))
        rp = ((r + 7) // 8) * 8                                # 8-row alignment
        blocks.append(jnp.pad(a, ((0, rp - r), (0, LANE_W - c))))
        off += rp
    wbuf = jnp.concatenate(blocks, axis=0)                     # (off, LANE_W)
    return wbuf, layout


# -----------------------------------------------------------------------------
# Pure-JAX reference (for a correctness self-check of the fused kernel)
# -----------------------------------------------------------------------------

def reference_forward(params, obs_nchw, others, log_std_bounds):
    P = jax.lax.Precision.HIGHEST
    x = obs_nchw.astype(jnp.float32)                           # NCHW
    for w, b in params["convs"]:                               # w: (F, C_in, 2, 2)
        acc = None
        for kh in range(2):
            for kw in range(2):
                t = jnp.einsum("nchw,fc->nfhw", x[:, :, kh::2, kw::2],
                               w[:, :, kh, kw], precision=P)
                acc = t if acc is None else acc + t
        x = jnp.maximum(acc + b[None, :, None, None], 0.0)
    feat = jnp.mean(x, axis=(2, 3))                            # adaptive_avg_pool2d
    tr = params["trunk"]
    z = jnp.concatenate([feat, others.astype(jnp.float32)], axis=1)
    z = jnp.maximum(jnp.dot(z, tr["w1"], precision=P) + tr["b1"], 0.0)
    z = jnp.maximum(jnp.dot(z, tr["w2"], precision=P) + tr["b2"], 0.0)
    out = jnp.dot(z, tr["w3"], precision=P) + tr["b3"]
    a_dim = out.shape[1] // 2
    mu, ls = out[:, :a_dim], out[:, a_dim:]
    ls = jnp.tanh(ls)
    lo, hi = log_std_bounds
    ls = lo + 0.5 * (hi - lo) * (ls + 1.0)
    return mu, jnp.exp(ls)


# -----------------------------------------------------------------------------
# Main
# -----------------------------------------------------------------------------

if __name__ == "__main__":
    key = jax.random.PRNGKey(0)
    k_obs, k_oth, k_par = jax.random.split(key, 3)

    batch = 2
    obs_shape = (4, 16, 16)          # (C, H, W): 16 -> 8 -> 4 -> 2 -> 1 over 4 convs
    action_dim = 2
    log_std_bounds = (-10.0, 2.0)

    obs = jax.random.normal(k_obs, (batch,) + obs_shape, dtype=jnp.float32)  # NCHW
    others = jax.random.normal(k_oth, (batch, 4), dtype=jnp.float32)

    params = init_params(k_par, obs_channels=obs_shape[0], action_dim=action_dim)
    wbuf, layout = pack_params(params)            # one-time packing, outside forward

    fwd = jax.jit(lambda wb, o, ot: actor_forward(wb, layout, o, ot, log_std_bounds))
    mu, std = fwd(wbuf, obs, others)
    jax.block_until_ready((mu, std))

    # Shape / sanity / numeric checks against the pure-JAX reference.
    assert mu.shape == (batch, action_dim) and std.shape == (batch, action_dim)
    assert bool(jnp.all(std > 0.0))
    mu_r, std_r = reference_forward(params, obs, others, log_std_bounds)
    assert bool(jnp.allclose(mu, mu_r, rtol=1e-2, atol=1e-3))
    assert bool(jnp.allclose(std, std_r, rtol=1e-2, atol=1e-3))
    print("KERNEL_OK")
</pallas_src>

<mosaic_0001>
module attributes {stable_mosaic.version = 11 : i64} {
  func.func @_actor_fused_kernel(%arg0: memref<512x16xf32, #tpu.memory_space<vmem>>, %arg1: memref<8x4xf32, #tpu.memory_space<vmem>>, %arg2: memref<280x64xf32, #tpu.memory_space<vmem>>, %arg3: memref<8x4xf32, #tpu.memory_space<vmem>>) attributes {dimension_semantics = [], scalar_prefetch = 0 : i64, scratch_operands = 0 : i64, tpu.core_type = #tpu.core_type<tc>} {
    %c0 = arith.constant 0 : index
    %c0_0 = arith.constant 0 : index
    %0 = vector.load %arg0[%c0, %c0_0] : memref<512x16xf32, #tpu.memory_space<vmem>>, vector<512x16xf32>
    %c0_1 = arith.constant 0 : index
    %c0_2 = arith.constant 0 : index
    %1 = vector.load %arg2[%c0_1, %c0_2] : memref<280x64xf32, #tpu.memory_space<vmem>>, vector<16x8xf32>
    %cst = arith.constant dense<0.000000e+00> : vector<512x8xf32>
    %2 = tpu.matmul %0, %1, %cst {dimension_numbers = #tpu.dot_dimension_numbers<[1], [0], [0], [1], [0, 0, 1, 1], [], []>} : vector<512x16xf32>, vector<16x8xf32>, vector<512x8xf32> -> vector<512x8xf32>
    %c16 = arith.constant 16 : index
    %c0_3 = arith.constant 0 : index
    %3 = vector.load %arg2[%c16, %c0_3] : memref<280x64xf32, #tpu.memory_space<vmem>>, vector<1x8xf32>
    %4 = vector.broadcast %3 : vector<1x8xf32> to vector<512x8xf32>
    %5 = arith.addf %2, %4 : vector<512x8xf32>
    %cst_4 = arith.constant 0.000000e+00 : f32
    %6 = vector.broadcast %cst_4 : f32 to vector<512x8xf32>
    %7 = arith.maximumf %5, %6 : vector<512x8xf32>
    %c24 = arith.constant 24 : index
    %c0_5 = arith.constant 0 : index
    %8 = vector.load %arg2[%c24, %c0_5] : memref<280x64xf32, #tpu.memory_space<vmem>>, vector<32x8xf32>
    %9 = vector.extract_strided_slice %7 {offsets = [0, 0], sizes = [128, 8], strides = [1, 1]} : vector<512x8xf32> to vector<128x8xf32>
    %10 = vector.extract_strided_slice %8 {offsets = [0, 0], sizes = [8, 8], strides = [1, 1]} : vector<32x8xf32> to vector<8x8xf32>
    %cst_6 = arith.constant dense<0.000000e+00> : vector<128x8xf32>
    %11 = tpu.matmul %9, %10, %cst_6 {dimension_numbers = #tpu.dot_dimension_numbers<[1], [0], [0], [1], [0, 0, 1, 1], [], []>} : vector<128x8xf32>, vector<8x8xf32>, vector<128x8xf32> -> vector<128x8xf32>
    %12 = vector.extract_strided_slice %7 {offsets = [128, 0], sizes = [128, 8], strides = [1, 1]} : vector<512x8xf32> to vector<128x8xf32>
    %13 = vector.extract_strided_slice %8 {offsets = [8, 0], sizes = [8, 8], strides = [1, 1]} : vector<32x8xf32> to vector<8x8xf32>
    %cst_7 = arith.constant dense<0.000000e+00> : vector<128x8xf32>
    %14 = tpu.matmul %12, %13, %cst_7 {dimension_numbers = #tpu.dot_dimension_numbers<[1], [0], [0], [1], [0, 0, 1, 1], [], []>} : vector<128x8xf32>, vector<8x8xf32>, vector<128x8xf32> -> vector<128x8xf32>
    %15 = arith.addf %11, %14 : vector<128x8xf32>
    %16 = vector.extract_strided_slice %7 {offsets = [256, 0], sizes = [128, 8], strides = [1, 1]} : vector<512x8xf32> to vector<128x8xf32>
    %17 = vector.extract_strided_slice %8 {offsets = [16, 0], sizes = [8, 8], strides = [1, 1]} : vector<32x8xf32> to vector<8x8xf32>
    %cst_8 = arith.constant dense<0.000000e+00> : vector<128x8xf32>
    %18 = tpu.matmul %16, %17, %cst_8 {dimension_numbers = #tpu.dot_dimension_numbers<[1], [0], [0], [1], [0, 0, 1, 1], [], []>} : vector<128x8xf32>, vector<8x8xf32>, vector<128x8xf32> -> vector<128x8xf32>
    %19 = arith.addf %15, %18 : vector<128x8xf32>
    %20 = vector.extract_strided_slice %7 {offsets = [384, 0], sizes = [128, 8], strides = [1, 1]} : vector<512x8xf32> to vector<128x8xf32>
    %21 = vector.extract_strided_slice %8 {offsets = [24, 0], sizes = [8, 8], strides = [1, 1]} : vector<32x8xf32> to vector<8x8xf32>
    %cst_9 = arith.constant dense<0.000000e+00> : vector<128x8xf32>
    %22 = tpu.matmul %20, %21, %cst_9 {dimension_numbers = #tpu.dot_dimension_numbers<[1], [0], [0], [1], [0, 0, 1, 1], [], []>} : vector<128x8xf32>, vector<8x8xf32>, vector<128x8xf32> -> vector<128x8xf32>
    %23 = arith.addf %19, %22 : vector<128x8xf32>
    %c56 = arith.constant 56 : index
    %c0_10 = arith.constant 0 : index
    %24 = vector.load %arg2[%c56, %c0_10] : memref<280x64xf32, #tpu.memory_space<vmem>>, vector<1x8xf32>
    %25 = vector.broadcast %24 : vector<1x8xf32> to vector<128x8xf32>
    %26 = arith.addf %23, %25 : vector<128x8xf32>
    %cst_11 = arith.constant 0.000000e+00 : f32
    %27 = vector.broadcast %cst_11 : f32 to vector<128x8xf32>
    %28 = arith.maximumf %26, %27 : vector<128x8xf32>
    %c64 = arith.constant 64 : index
    %c0_12 = arith.constant 0 : index
    %29 = vector.load %arg2[%c64, %c0_12] : memref<280x64xf32, #tpu.memory_space<vmem>>, vector<32x8xf32>
    %30 = vector.extract_strided_slice %28 {offsets = [0, 0], sizes = [32, 8], strides = [1, 1]} : vector<128x8xf32> to vector<32x8xf32>
    %31 = vector.extract_strided_slice %29 {offsets = [0, 0], sizes = [8, 8], strides = [1, 1]} : vector<32x8xf32> to vector<8x8xf32>
    %cst_13 = arith.constant dense<0.000000e+00> : vector<32x8xf32>
    %32 = tpu.matmul %30, %31, %cst_13 {dimension_numbers = #tpu.dot_dimension_numbers<[1], [0], [0], [1], [0, 0, 1, 1], [], []>} : vector<32x8xf32>, vector<8x8xf32>, vector<32x8xf32> -> vector<32x8xf32>
    %33 = vector.extract_strided_slice %28 {offsets = [32, 0], sizes = [32, 8], strides = [1, 1]} : vector<128x8xf32> to vector<32x8xf32>
    %34 = vector.extract_strided_slice %29 {offsets = [8, 0], sizes = [8, 8], strides = [1, 1]} : vector<32x8xf32> to vector<8x8xf32>
    %cst_14 = arith.constant dense<0.000000e+00> : vector<32x8xf32>
    %35 = tpu.matmul %33, %34, %cst_14 {dimension_numbers = #tpu.dot_dimension_numbers<[1], [0], [0], [1], [0, 0, 1, 1], [], []>} : vector<32x8xf32>, vector<8x8xf32>, vector<32x8xf32> -> vector<32x8xf32>
    %36 = arith.addf %32, %35 : vector<32x8xf32>
    %37 = vector.extract_strided_slice %28 {offsets = [64, 0], sizes = [32, 8], strides = [1, 1]} : vector<128x8xf32> to vector<32x8xf32>
    %38 = vector.extract_strided_slice %29 {offsets = [16, 0], sizes = [8, 8], strides = [1, 1]} : vector<32x8xf32> to vector<8x8xf32>
    %cst_15 = arith.constant dense<0.000000e+00> : vector<32x8xf32>
    %39 = tpu.matmul %37, %38, %cst_15 {dimension_numbers = #tpu.dot_dimension_numbers<[1], [0], [0], [1], [0, 0, 1, 1], [], []>} : vector<32x8xf32>, vector<8x8xf32>, vector<32x8xf32> -> vector<32x8xf32>
    %40 = arith.addf %36, %39 : vector<32x8xf32>
    %41 = vector.extract_strided_slice %28 {offsets = [96, 0], sizes = [32, 8], strides = [1, 1]} : vector<128x8xf32> to vector<32x8xf32>
    %42 = vector.extract_strided_slice %29 {offsets = [24, 0], sizes = [8, 8], strides = [1, 1]} : vector<32x8xf32> to vector<8x8xf32>
    %cst_16 = arith.constant dense<0.000000e+00> : vector<32x8xf32>
    %43 = tpu.matmul %41, %42, %cst_16 {dimension_numbers = #tpu.dot_dimension_numbers<[1], [0], [0], [1], [0, 0, 1, 1], [], []>} : vector<32x8xf32>, vector<8x8xf32>, vector<32x8xf32> -> vector<32x8xf32>
    %44 = arith.addf %40, %43 : vector<32x8xf32>
    %c96 = arith.constant 96 : index
    %c0_17 = arith.constant 0 : index
    %45 = vector.load %arg2[%c96, %c0_17] : memref<280x64xf32, #tpu.memory_space<vmem>>, vector<1x8xf32>
    %46 = vector.broadcast %45 : vector<1x8xf32> to vector<32x8xf32>
    %47 = arith.addf %44, %46 : vector<32x8xf32>
    %cst_18 = arith.constant 0.000000e+00 : f32
    %48 = vector.broadcast %cst_18 : f32 to vector<32x8xf32>
    %49 = arith.maximumf %47, %48 : vector<32x8xf32>
    %c104 = arith.constant 104 : index
    %c0_19 = arith.constant 0 : index
    %50 = vector.load %arg2[%c104, %c0_19] : memref<280x64xf32, #tpu.memory_space<vmem>>, vector<32x8xf32>
    %51 = vector.extract_strided_slice %49 {offsets = [0, 0], sizes = [8, 8], strides = [1, 1]} : vector<32x8xf32> to vector<8x8xf32>
    %52 = vector.extract_strided_slice %50 {offsets = [0, 0], sizes = [8, 8], strides = [1, 1]} : vector<32x8xf32> to vector<8x8xf32>
    %cst_20 = arith.constant dense<0.000000e+00> : vector<8x8xf32>
    %53 = tpu.matmul %51, %52, %cst_20 {dimension_numbers = #tpu.dot_dimension_numbers<[1], [0], [0], [1], [0, 0, 1, 1], [], []>} : vector<8x8xf32>, vector<8x8xf32>, vector<8x8xf32> -> vector<8x8xf32>
    %54 = vector.extract_strided_slice %49 {offsets = [8, 0], sizes = [8, 8], strides = [1, 1]} : vector<32x8xf32> to vector<8x8xf32>
    %55 = vector.extract_strided_slice %50 {offsets = [8, 0], sizes = [8, 8], strides = [1, 1]} : vector<32x8xf32> to vector<8x8xf32>
    %cst_21 = arith.constant dense<0.000000e+00> : vector<8x8xf32>
    %56 = tpu.matmul %54, %55, %cst_21 {dimension_numbers = #tpu.dot_dimension_numbers<[1], [0], [0], [1], [0, 0, 1, 1], [], []>} : vector<8x8xf32>, vector<8x8xf32>, vector<8x8xf32> -> vector<8x8xf32>
    %57 = arith.addf %53, %56 : vector<8x8xf32>
    %58 = vector.extract_strided_slice %49 {offsets = [16, 0], sizes = [8, 8], strides = [1, 1]} : vector<32x8xf32> to vector<8x8xf32>
    %59 = vector.extract_strided_slice %50 {offsets = [16, 0], sizes = [8, 8], strides = [1, 1]} : vector<32x8xf32> to vector<8x8xf32>
    %cst_22 = arith.constant dense<0.000000e+00> : vector<8x8xf32>
    %60 = tpu.matmul %58, %59, %cst_22 {dimension_numbers = #tpu.dot_dimension_numbers<[1], [0], [0], [1], [0, 0, 1, 1], [], []>} : vector<8x8xf32>, vector<8x8xf32>, vector<8x8xf32> -> vector<8x8xf32>
    %61 = arith.addf %57, %60 : vector<8x8xf32>
    %62 = vector.extract_strided_slice %49 {offsets = [24, 0], sizes = [8, 8], strides = [1, 1]} : vector<32x8xf32> to vector<8x8xf32>
    %63 = vector.extract_strided_slice %50 {offsets = [24, 0], sizes = [8, 8], strides = [1, 1]} : vector<32x8xf32> to vector<8x8xf32>
    %cst_23 = arith.constant dense<0.000000e+00> : vector<8x8xf32>
    %64 = tpu.matmul %62, %63, %cst_23 {dimension_numbers = #tpu.dot_dimension_numbers<[1], [0], [0], [1], [0, 0, 1, 1], [], []>} : vector<8x8xf32>, vector<8x8xf32>, vector<8x8xf32> -> vector<8x8xf32>
    %65 = arith.addf %61, %64 : vector<8x8xf32>
    %c136 = arith.constant 136 : index
    %c0_24 = arith.constant 0 : index
    %66 = vector.load %arg2[%c136, %c0_24] : memref<280x64xf32, #tpu.memory_space<vmem>>, vector<1x8xf32>
    %67 = vector.broadcast %66 : vector<1x8xf32> to vector<8x8xf32>
    %68 = arith.addf %65, %67 : vector<8x8xf32>
    %cst_25 = arith.constant 0.000000e+00 : f32
    %69 = vector.broadcast %cst_25 : f32 to vector<8x8xf32>
    %70 = arith.maximumf %68, %69 : vector<8x8xf32>
    %c144 = arith.constant 144 : index
    %c0_26 = arith.constant 0 : index
    %71 = vector.load %arg2[%c144, %c0_26] : memref<280x64xf32, #tpu.memory_space<vmem>>, vector<8x64xf32>
    %cst_27 = arith.constant dense<0.000000e+00> : vector<8x64xf32>
    %72 = tpu.matmul %70, %71, %cst_27 {dimension_numbers = #tpu.dot_dimension_numbers<[1], [0], [0], [1], [0, 0, 1, 1], [], []>} : vector<8x8xf32>, vector<8x64xf32>, vector<8x64xf32> -> vector<8x64xf32>
    %c0_28 = arith.constant 0 : index
    %c0_29 = arith.constant 0 : index
    %73 = vector.load %arg1[%c0_28, %c0_29] : memref<8x4xf32, #tpu.memory_space<vmem>>, vector<8x4xf32>
    %c152 = arith.constant 152 : index
    %c0_30 = arith.constant 0 : index
    %74 = vector.load %arg2[%c152, %c0_30] : memref<280x64xf32, #tpu.memory_space<vmem>>, vector<4x64xf32>
    %cst_31 = arith.constant dense<0.000000e+00> : vector<8x64xf32>
    %75 = tpu.matmul %73, %74, %cst_31 {dimension_numbers = #tpu.dot_dimension_numbers<[1], [0], [0], [1], [0, 0, 1, 1], [], []>} : vector<8x4xf32>, vector<4x64xf32>, vector<8x64xf32> -> vector<8x64xf32>
    %76 = arith.addf %72, %75 : vector<8x64xf32>
    %c160 = arith.constant 160 : index
    %c0_32 = arith.constant 0 : index
    %77 = vector.load %arg2[%c160, %c0_32] : memref<280x64xf32, #tpu.memory_space<vmem>>, vector<1x64xf32>
    %78 = vector.broadcast %77 : vector<1x64xf32> to vector<8x64xf32>
    %79 = arith.addf %76, %78 : vector<8x64xf32>
    %cst_33 = arith.constant 0.000000e+00 : f32
    %80 = vector.broadcast %cst_33 : f32 to vector<8x64xf32>
    %81 = arith.maximumf %79, %80 : vector<8x64xf32>
    %c168 = arith.constant 168 : index
    %c0_34 = arith.constant 0 : index
    %82 = vector.load %arg2[%c168, %c0_34] : memref<280x64xf32, #tpu.memory_space<vmem>>, vector<64x32xf32>
    %cst_35 = arith.constant dense<0.000000e+00> : vector<8x32xf32>
    %83 = tpu.matmul %81, %82, %cst_35 {dimension_numbers = #tpu.dot_dimension_numbers<[1], [0], [0], [1], [0, 0, 1, 1], [], []>} : vector<8x64xf32>, vector<64x32xf32>, vector<8x32xf32> -> vector<8x32xf32>
    %c232 = arith.constant 232 : index
    %c0_36 = arith.constant 0 : index
    %84 = vector.load %arg2[%c232, %c0_36] : memref<280x64xf32, #tpu.memory_space<vmem>>, vector<1x32xf32>
    %85 = vector.broadcast %84 : vector<1x32xf32> to vector<8x32xf32>
    %86 = arith.addf %83, %85 : vector<8x32xf32>
    %cst_37 = arith.constant 0.000000e+00 : f32
    %87 = vector.broadcast %cst_37 : f32 to vector<8x32xf32>
    %88 = arith.maximumf %86, %87 : vector<8x32xf32>
    %c240 = arith.constant 240 : index
    %c0_38 = arith.constant 0 : index
    %89 = vector.load %arg2[%c240, %c0_38] : memref<280x64xf32, #tpu.memory_space<vmem>>, vector<32x4xf32>
    %cst_39 = arith.constant dense<0.000000e+00> : vector<8x4xf32>
    %90 = tpu.matmul %88, %89, %cst_39 {dimension_numbers = #tpu.dot_dimension_numbers<[1], [0], [0], [1], [0, 0, 1, 1], [], []>} : vector<8x32xf32>, vector<32x4xf32>, vector<8x4xf32> -> vector<8x4xf32>
    %c272 = arith.constant 272 : index
    %c0_40 = arith.constant 0 : index
    %91 = vector.load %arg2[%c272, %c0_40] : memref<280x64xf32, #tpu.memory_space<vmem>>, vector<1x4xf32>
    %92 = vector.broadcast %91 : vector<1x4xf32> to vector<8x4xf32>
    %93 = arith.addf %90, %92 : vector<8x4xf32>
    %94 = math.tanh %93 : vector<8x4xf32>
    %cst_41 = arith.constant 1.000000e+00 : f32
    %95 = vector.broadcast %cst_41 : f32 to vector<8x4xf32>
    %96 = arith.addf %94, %95 : vector<8x4xf32>
    %cst_42 = arith.constant 6.000000e+00 : f32
    %97 = vector.broadcast %cst_42 : f32 to vector<8x4xf32>
    %98 = arith.mulf %97, %96 : vector<8x4xf32>
    %cst_43 = arith.constant -1.000000e+01 : f32
    %99 = vector.broadcast %cst_43 : f32 to vector<8x4xf32>
    %100 = arith.addf %99, %98 : vector<8x4xf32>
    %101 = tpu.iota {dimensions = array<i32: 1>} : vector<8x4xi32>
    %c2_i32 = arith.constant 2 : i32
    %102 = vector.broadcast %c2_i32 : i32 to vector<8x4xi32>
    %103 = arith.cmpi slt, %101, %102 : vector<8x4xi32>
    %104 = math.exp %100 : vector<8x4xf32>
    %105 = arith.select %103, %93, %104 : vector<8x4xi1>, vector<8x4xf32>
    %c0_44 = arith.constant 0 : index
    %c0_45 = arith.constant 0 : index
    %106 = vector.load %arg3[%c0_44, %c0_45] : memref<8x4xf32, #tpu.memory_space<vmem>>, vector<8x4xf32>
    tpu.vector_store %arg3[%c0_44, %c0_45], %105 {strides = array<i32>} : memref<8x4xf32, #tpu.memory_space<vmem>>, vector<8x4xf32>,
    return
  }
}

</mosaic_0001>

<llo_original>
// kernel: _lambda_.1
$region0: #{_lambda_.1}
  #allocation0 [shape = 'u32[]', space=smem, size = 0x4, offset = 0x4, fixed_abs, tag = 'smem constant byte address 0x4 - core index']
  #allocation1 [shape = 'u32[144,128]{1,0:T(1,128)}', space=vmem, size = 0x12000, scoped, tag = 'internal scratch']
  %s0 = inlined_call_operand.vmem [shape: f32[512,16], index: 0, kind: input, shape index: {}]
  %s1 = inlined_call_operand.vmem [shape: f32[8,4], index: 1, kind: input, shape index: {}]
  %s2 = inlined_call_operand.vmem [shape: f32[280,64], index: 2, kind: input, shape index: {}]
  %s3 = inlined_call_operand.vmem [shape: f32[8,4], index: 3, kind: output, shape index: {}]
  %s4 = sld [smem:[#allocation0]]
  $region22: #{_lambda_.1} parent=0
    _
  %s6 = ssub.s32 1, %s4
  %s7 = scalar_select 0, %s6, %s4
  // Predicated region
  $region2: #{_lambda_.1} parent=0 // pred_check
    _
  $region3: #{_lambda_.1} parent=0 // pred_check_branch
    %9 = sbr.rel (0) target = $region5
  $region4: #{_lambda_.1} parent=0 // pred_region
    _
  $region5: #{_lambda_.1} parent=0 // pred_fallthru
    _
  // Predicated region
  $region6: #{_lambda_.1} parent=0 // pred_check
    _
  $region7: #{_lambda_.1} parent=0 // pred_check_branch
    %11 = sbr.rel (0) target = $region9
  $region8: #{_lambda_.1} parent=0 // pred_region
    _
  $region9: #{_lambda_.1} parent=0 // pred_fallthru
    _
  // Predicated region
  $region10: #{_lambda_.1} parent=0 // pred_check
    _
  $region11: #{_lambda_.1} parent=0 // pred_check_branch
    %13 = sbr.rel (0) target = $region13
  $region12: #{_lambda_.1} parent=0 // pred_region
    _
  $region13: #{_lambda_.1} parent=0 // pred_fallthru
    _
  %v14 = vld [vmem:[%s0] sm:$0xff]
  %v15 = vld [vmem:[%s0 + $0x8] sm:$0xff]
  %v16 = vld [vmem:[%s0 + $0x10] sm:$0xff]
  %v17 = vld [vmem:[%s0 + $0x18] sm:$0xff]
  %v18 = vld [vmem:[%s0 + $0x20] sm:$0xff]
  %v19 = vld [vmem:[%s0 + $0x28] sm:$0xff]
  %v20 = vld [vmem:[%s0 + $0x30] sm:$0xff]
  %v21 = vld [vmem:[%s0 + $0x38] sm:$0xff]
  %v22 = vld [vmem:[%s0 + $0x40] sm:$0xff]
  %v23 = vld [vmem:[%s0 + $0x48] sm:$0xff]
  %v24 = vld [vmem:[%s0 + $0x50] sm:$0xff]
  %v25 = vld [vmem:[%s0 + $0x58] sm:$0xff]
  %v26 = vld [vmem:[%s0 + $0x60] sm:$0xff]
  %v27 = vld [vmem:[%s0 + $0x68] sm:$0xff]
  %v28 = vld [vmem:[%s0 + $0x70] sm:$0xff]
  %v29 = vld [vmem:[%s0 + $0x78] sm:$0xff]
  %v30 = vld [vmem:[%s0 + $0x80] sm:$0xff]
  %v31 = vld [vmem:[%s0 + $0x88] sm:$0xff]
  %v32 = vld [vmem:[%s0 + $0x90] sm:$0xff]
  %v33 = vld [vmem:[%s0 + $0x98] sm:$0xff]
  %v34 = vld [vmem:[%s0 + $0xa0] sm:$0xff]
  %v35 = vld [vmem:[%s0 + $0xa8] sm:$0xff]
  %v36 = vld [vmem:[%s0 + $0xb0] sm:$0xff]
  %v37 = vld [vmem:[%s0 + $0xb8] sm:$0xff]
  %v38 = vld [vmem:[%s0 + $0xc0] sm:$0xff]
  %v39 = vld [vmem:[%s0 + $0xc8] sm:$0xff]
  %v40 = vld [vmem:[%s0 + $0xd0] sm:$0xff]
  %v41 = vld [vmem:[%s0 + $0xd8] sm:$0xff]
  %v42 = vld [vmem:[%s0 + $0xe0] sm:$0xff]
  %v43 = vld [vmem:[%s0 + $0xe8] sm:$0xff]
  %v44 = vld [vmem:[%s0 + $0xf0] sm:$0xff]
  %v45 = vld [vmem:[%s0 + $0xf8] sm:$0xff]
  %v46 = vld [vmem:[%s0 + $0x100] sm:$0xff]
  %v47 = vld [vmem:[%s0 + $0x108] sm:$0xff]
  %v48 = vld [vmem:[%s0 + $0x110] sm:$0xff]
  %v49 = vld [vmem:[%s0 + $0x118] sm:$0xff]
  %v50 = vld [vmem:[%s0 + $0x120] sm:$0xff]
  %v51 = vld [vmem:[%s0 + $0x128] sm:$0xff]
  %v52 = vld [vmem:[%s0 + $0x130] sm:$0xff]
  %v53 = vld [vmem:[%s0 + $0x138] sm:$0xff]
  %v54 = vld [vmem:[%s0 + $0x140] sm:$0xff]
  %v55 = vld [vmem:[%s0 + $0x148] sm:$0xff]
  %v56 = vld [vmem:[%s0 + $0x150] sm:$0xff]
  %v57 = vld [vmem:[%s0 + $0x158] sm:$0xff]
  %v58 = vld [vmem:[%s0 + $0x160] sm:$0xff]
  %v59 = vld [vmem:[%s0 + $0x168] sm:$0xff]
  %v60 = vld [vmem:[%s0 + $0x170] sm:$0xff]
  %v61 = vld [vmem:[%s0 + $0x178] sm:$0xff]
  %v62 = vld [vmem:[%s0 + $0x180] sm:$0xff]
  %v63 = vld [vmem:[%s0 + $0x188] sm:$0xff]
  %v64 = vld [vmem:[%s0 + $0x190] sm:$0xff]
  %v65 = vld [vmem:[%s0 + $0x198] sm:$0xff]
  %v66 = vld [vmem:[%s0 + $0x1a0] sm:$0xff]
  %v67 = vld [vmem:[%s0 + $0x1a8] sm:$0xff]
  %v68 = vld [vmem:[%s0 + $0x1b0] sm:$0xff]
  %v69 = vld [vmem:[%s0 + $0x1b8] sm:$0xff]
  %v70 = vld [vmem:[%s0 + $0x1c0] sm:$0xff]
  %v71 = vld [vmem:[%s0 + $0x1c8] sm:$0xff]
  %v72 = vld [vmem:[%s0 + $0x1d0] sm:$0xff]
  %v73 = vld [vmem:[%s0 + $0x1d8] sm:$0xff]
  %v74 = vld [vmem:[%s0 + $0x1e0] sm:$0xff]
  %v75 = vld [vmem:[%s0 + $0x1e8] sm:$0xff]
  %v76 = vld [vmem:[%s0 + $0x1f0] sm:$0xff]
  %v77 = vld [vmem:[%s0 + $0x1f8] sm:$0xff]
  %v78 = vld [vmem:[%s2] sm:$0xff]
  %v79 = vld [vmem:[%s2 + $0x8] sm:$0xff]
  %v80 = vld [vmem:[%s2 + $0x10] sm:$0x1]
  %v81 = vlaneseq
  %v82 = vshrl.u32 %v81, 7
  %v83 = vsub.s32 0, %v82
  %v84 = vrot.slane %v80, %v83
  %vm85 = vcmask 130048
  %v87 = vsel %vm85, %v14, 0
  %v90 = vsel %vm85, %v15, 0
  %v93 = vsel %vm85, %v16, 0
  %v96 = vsel %vm85, %v17, 0
  %v99 = vsel %vm85, %v18, 0
  %v102 = vsel %vm85, %v19, 0
  %v105 = vsel %vm85, %v20, 0
  %v108 = vsel %vm85, %v21, 0
  %v111 = vsel %vm85, %v22, 0
  %v114 = vsel %vm85, %v23, 0
  %v117 = vsel %vm85, %v24, 0
  %v120 = vsel %vm85, %v25, 0
  %v123 = vsel %vm85, %v26, 0
  %v126 = vsel %vm85, %v27, 0
  %v129 = vsel %vm85, %v28, 0
  %v132 = vsel %vm85, %v29, 0
  %v135 = vsel %vm85, %v30, 0
  %v138 = vsel %vm85, %v31, 0
  %v141 = vsel %vm85, %v32, 0
  %v144 = vsel %vm85, %v33, 0
  %v147 = vsel %vm85, %v34, 0
  %v150 = vsel %vm85, %v35, 0
  %v153 = vsel %vm85, %v36, 0
  %v156 = vsel %vm85, %v37, 0
  %v159 = vsel %vm85, %v38, 0
  %v162 = vsel %vm85, %v39, 0
  %v165 = vsel %vm85, %v40, 0
  %v168 = vsel %vm85, %v41, 0
  %v171 = vsel %vm85, %v42, 0
  %v174 = vsel %vm85, %v43, 0
  %v177 = vsel %vm85, %v44, 0
  %v180 = vsel %vm85, %v45, 0
  %v183 = vsel %vm85, %v46, 0
  %v186 = vsel %vm85, %v47, 0
  %v189 = vsel %vm85, %v48, 0
  %v192 = vsel %vm85, %v49, 0
  %v195 = vsel %vm85, %v50, 0
  %v198 = vsel %vm85, %v51, 0
  %v201 = vsel %vm85, %v52, 0
  %v204 = vsel %vm85, %v53, 0
  %v207 = vsel %vm85, %v54, 0
  %v210 = vsel %vm85, %v55, 0
  %v213 = vsel %vm85, %v56, 0
  %v216 = vsel %vm85, %v57, 0
  %v219 = vsel %vm85, %v58, 0
  %v222 = vsel %vm85, %v59, 0
  %v225 = vsel %vm85, %v60, 0
  %v228 = vsel %vm85, %v61, 0
  %v231 = vsel %vm85, %v62, 0
  %v234 = vsel %vm85, %v63, 0
  %v237 = vsel %vm85, %v64, 0
  %v240 = vsel %vm85, %v65, 0
  %v243 = vsel %vm85, %v66, 0
  %v246 = vsel %vm85, %v67, 0
  %v249 = vsel %vm85, %v68, 0
  %v252 = vsel %vm85, %v69, 0
  %v255 = vsel %vm85, %v70, 0
  %v258 = vsel %vm85, %v71, 0
  %v261 = vsel %vm85, %v72, 0
  %v264 = vsel %vm85, %v73, 0
  %v267 = vsel %vm85, %v74, 0
  %v270 = vsel %vm85, %v75, 0
  %v273 = vsel %vm85, %v76, 0
  %v276 = vsel %vm85, %v77, 0
  %278 = vmatprep.subr.mxu0 0.0
  %279 = vmatpush1.msra.mxu0 %v78
  %280 = vmatprep.subr.mxu0 0.0
  %281 = vmatpush1.msra.mxu0 %v79
  %282 = vmatprep.subr.mxu0 0.0
  %283 = vmatpush1.msra.mxu0 0.0
  %284 = vmatprep.subr.mxu0 0.0
  %285 = vmatpush1.msra.mxu0 0.0
  %286 = vmatprep.subr.mxu0 0.0
  %287 = vmatpush1.msra.mxu0 0.0
  %288 = vmatprep.subr.mxu0 0.0
  %289 = vmatpush1.msra.mxu0 0.0
  %290 = vmatprep.subr.mxu0 0.0
  %291 = vmatpush1.msra.mxu0 0.0
  %292 = vmatprep.subr.mxu0 0.0
  %293 = vmatpush1.msra.mxu0 0.0
  %294 = vmatprep.subr.mxu0 0.0
  %295 = vmatpush1.msra.mxu0 0.0
  %296 = vmatprep.subr.mxu0 0.0
  %297 = vmatpush1.msra.mxu0 0.0
  %298 = vmatprep.subr.mxu0 0.0
  %299 = vmatpush1.msra.mxu0 0.0
  %300 = vmatprep.subr.mxu0 0.0
  %301 = vmatpush1.msra.mxu0 0.0
  %302 = vmatprep.subr.mxu0 0.0
  %303 = vmatpush1.msra.mxu0 0.0
  %304 = vmatprep.subr.mxu0 0.0
  %305 = vmatpush1.msra.mxu0 0.0
  %306 = vmatprep.subr.mxu0 0.0
  %307 = vmatpush1.msra.mxu0 0.0
  %308 = vmatprep.subr.mxu0 0.0
  %309 = vmatpush1.msra.mxu0 0.0
  %310 = vmatprep.subr.mxu0 0.0
  %311 = vmatpush1.msra.mxu0 0.0
  %312 = vmatprep.subr.mxu0 0.0
  %313 = vmatpush1.msra.mxu0 0.0
  %314 = vmatprep.subr.mxu0 0.0
  %315 = vmatpush1.msra.mxu0 0.0
  %316 = vmatprep.subr.mxu0 0.0
  %317 = vmatpush1.msra.mxu0 0.0
  %318 = vmatprep.subr.mxu0 0.0
  %319 = vmatpush1.msra.mxu0 0.0
  %320 = vmatprep.subr.mxu0 0.0
  %321 = vmatpush1.msra.mxu0 0.0
  %322 = vmatprep.subr.mxu0 0.0
  %323 = vmatpush1.msra.mxu0 0.0
  %324 = vmatprep.subr.mxu0 0.0
  %325 = vmatpush1.msra.mxu0 0.0
  %326 = vmatprep.subr.mxu0 0.0
  %327 = vmatpush1.msra.mxu0 0.0
  %328 = vmatprep.subr.mxu0 0.0
  %329 = vmatpush1.msra.mxu0 0.0
  %330 = vmatprep.subr.mxu0 0.0
  %331 = vmatpush1.msra.mxu0 0.0
  %332 = vmatprep.subr.mxu0 0.0
  %333 = vmatpush1.msra.mxu0 0.0
  %334 = vmatprep.subr.mxu0 0.0
  %335 = vmatpush1.msra.mxu0 0.0
  %336 = vmatprep.subr.mxu0 0.0
  %337 = vmatpush1.msra.mxu0 0.0
  %338 = vmatprep.subr.mxu0 0.0
  %339 = vmatpush1.msra.mxu0 0.0
  %340 = vmatprep.subr.mxu0 0.0
  %341 = vmatpush1.msra.mxu0 0.0
  %342 = vmatprep.mubr.f32.mxu0 0.0
  %343 = vmatmul.mubr.f32.gmra.mrb[0].mxu0 %v87
  %v344 = vpop.f32.mrb[0].mxu0
  %v345 = vadd.f32 %v84, %v344
  %v346 = vpop.f32.mrb[0].mxu0
  %347 = vmatprep.mubr.f32.mxu0 0.0
  %348 = vmatmul.mubr.f32.gmra.mrb[0].mxu0 %v90
  %v349 = vpop.f32.mrb[0].mxu0
  %v350 = vadd.f32 %v84, %v349
  %v351 = vpop.f32.mrb[0].mxu0
  %352 = vmatprep.mubr.f32.mxu0 0.0
  %353 = vmatmul.mubr.f32.gmra.mrb[0].mxu0 %v93
  %v354 = vpop.f32.mrb[0].mxu0
  %v355 = vadd.f32 %v84, %v354
  %v356 = vpop.f32.mrb[0].mxu0
  %357 = vmatprep.mubr.f32.mxu0 0.0
  %358 = vmatmul.mubr.f32.gmra.mrb[0].mxu0 %v96
  %v359 = vpop.f32.mrb[0].mxu0
  %v360 = vadd.f32 %v84, %v359
  %v361 = vpop.f32.mrb[0].mxu0
  %362 = vmatprep.mubr.f32.mxu0 0.0
  %363 = vmatmul.mubr.f32.gmra.mrb[0].mxu0 %v99
  %v364 = vpop.f32.mrb[0].mxu0
  %v365 = vadd.f32 %v84, %v364
  %v366 = vpop.f32.mrb[0].mxu0
  %367 = vmatprep.mubr.f32.mxu0 0.0
  %368 = vmatmul.mubr.f32.gmra.mrb[0].mxu0 %v102
  %v369 = vpop.f32.mrb[0].mxu0
  %v370 = vadd.f32 %v84, %v369
  %v371 = vpop.f32.mrb[0].mxu0
  %372 = vmatprep.mubr.f32.mxu0 0.0
  %373 = vmatmul.mubr.f32.gmra.mrb[0].mxu0 %v105
  %v374 = vpop.f32.mrb[0].mxu0
  %v375 = vadd.f32 %v84, %v374
  %v376 = vpop.f32.mrb[0].mxu0
  %377 = vmatprep.mubr.f32.mxu0 0.0
  %378 = vmatmul.mubr.f32.gmra.mrb[0].mxu0 %v108
  %v379 = vpop.f32.mrb[0].mxu0
  %v380 = vadd.f32 %v84, %v379
  %v381 = vpop.f32.mrb[0].mxu0
  %382 = vmatprep.mubr.f32.mxu0 0.0
  %383 = vmatmul.mubr.f32.gmra.mrb[0].mxu0 %v111
  %v384 = vpop.f32.mrb[0].mxu0
  %v385 = vadd.f32 %v84, %v384
  %v386 = vpop.f32.mrb[0].mxu0
  %387 = vmatprep.mubr.f32.mxu0 0.0
  %388 = vmatmul.mubr.f32.gmra.mrb[0].mxu0 %v114
  %v389 = vpop.f32.mrb[0].mxu0
  %v390 = vadd.f32 %v84, %v389
  %v391 = vpop.f32.mrb[0].mxu0
  %392 = vmatprep.mubr.f32.mxu0 0.0
  %393 = vmatmul.mubr.f32.gmra.mrb[0].mxu0 %v117
  %v394 = vpop.f32.mrb[0].mxu0
  %v395 = vadd.f32 %v84, %v394
  %v396 = vpop.f32.mrb[0].mxu0
  %397 = vmatprep.mubr.f32.mxu0 0.0
  %398 = vmatmul.mubr.f32.gmra.mrb[0].mxu0 %v120
  %v399 = vpop.f32.mrb[0].mxu0
  %v400 = vadd.f32 %v84, %v399
  %v401 = vpop.f32.mrb[0].mxu0
  %402 = vmatprep.mubr.f32.mxu0 0.0
  %403 = vmatmul.mubr.f32.gmra.mrb[0].mxu0 %v123
  %v404 = vpop.f32.mrb[0].mxu0
  %v405 = vadd.f32 %v84, %v404
  %v406 = vpop.f32.mrb[0].mxu0
  %407 = vmatprep.mubr.f32.mxu0 0.0
  %408 = vmatmul.mubr.f32.gmra.mrb[0].mxu0 %v126
  %v409 = vpop.f32.mrb[0].mxu0
  %v410 = vadd.f32 %v84, %v409
  %v411 = vpop.f32.mrb[0].mxu0
  %412 = vmatprep.mubr.f32.mxu0 0.0
  %413 = vmatmul.mubr.f32.gmra.mrb[0].mxu0 %v129
  %v414 = vpop.f32.mrb[0].mxu0
  %v415 = vadd.f32 %v84, %v414
  %v416 = vpop.f32.mrb[0].mxu0
  %417 = vmatprep.mubr.f32.mxu0 0.0
  %418 = vmatmul.mubr.f32.gmra.mrb[0].mxu0 %v132
  %v419 = vpop.f32.mrb[0].mxu0
  %v420 = vadd.f32 %v84, %v419
  %v421 = vpop.f32.mrb[0].mxu0
  %422 = vmatprep.mubr.f32.mxu0 0.0
  %423 = vmatmul.mubr.f32.gmra.mrb[0].mxu0 %v135
  %v424 = vpop.f32.mrb[0].mxu0
  %v425 = vadd.f32 %v84, %v424
  %v426 = vpop.f32.mrb[0].mxu0
  %427 = vmatprep.mubr.f32.mxu0 0.0
  %428 = vmatmul.mubr.f32.gmra.mrb[0].mxu0 %v138
  %v429 = vpop.f32.mrb[0].mxu0
  %v430 = vadd.f32 %v84, %v429
  %v431 = vpop.f32.mrb[0].mxu0
  %432 = vmatprep.mubr.f32.mxu0 0.0
  %433 = vmatmul.mubr.f32.gmra.mrb[0].mxu0 %v141
  %v434 = vpop.f32.mrb[0].mxu0
  %v435 = vadd.f32 %v84, %v434
  %v436 = vpop.f32.mrb[0].mxu0
  %437 = vmatprep.mubr.f32.mxu0 0.0
  %438 = vmatmul.mubr.f32.gmra.mrb[0].mxu0 %v144
  %v439 = vpop.f32.mrb[0].mxu0
  %v440 = vadd.f32 %v84, %v439
  %v441 = vpop.f32.mrb[0].mxu0
  %442 = vmatprep.mubr.f32.mxu0 0.0
  %443 = vmatmul.mubr.f32.gmra.mrb[0].mxu0 %v147
  %v444 = vpop.f32.mrb[0].mxu0
  %v445 = vadd.f32 %v84, %v444
  %v446 = vpop.f32.mrb[0].mxu0
  %447 = vmatprep.mubr.f32.mxu0 0.0
  %448 = vmatmul.mubr.f32.gmra.mrb[0].mxu0 %v150
  %v449 = vpop.f32.mrb[0].mxu0
  %v450 = vadd.f32 %v84, %v449
  %v451 = vpop.f32.mrb[0].mxu0
  %452 = vmatprep.mubr.f32.mxu0 0.0
  %453 = vmatmul.mubr.f32.gmra.mrb[0].mxu0 %v153
  %v454 = vpop.f32.mrb[0].mxu0
  %v455 = vadd.f32 %v84, %v454
  %v456 = vpop.f32.mrb[0].mxu0
  %457 = vmatprep.mubr.f32.mxu0 0.0
  %458 = vmatmul.mubr.f32.gmra.mrb[0].mxu0 %v156
  %v459 = vpop.f32.mrb[0].mxu0
  %v460 = vadd.f32 %v84, %v459
  %v461 = vpop.f32.mrb[0].mxu0
  %462 = vmatprep.mubr.f32.mxu0 0.0
  %463 = vmatmul.mubr.f32.gmra.mrb[0].mxu0 %v159
  %v464 = vpop.f32.mrb[0].mxu0
  %v465 = vadd.f32 %v84, %v464
  %v466 = vpop.f32.mrb[0].mxu0
  %467 = vmatprep.mubr.f32.mxu0 0.0
  %468 = vmatmul.mubr.f32.gmra.mrb[0].mxu0 %v162
  %v469 = vpop.f32.mrb[0].mxu0
  %v470 = vadd.f32 %v84, %v469
  %v471 = vpop.f32.mrb[0].mxu0
  %472 = vmatprep.mubr.f32.mxu0 0.0
  %473 = vmatmul.mubr.f32.gmra.mrb[0].mxu0 %v165
  %v474 = vpop.f32.mrb[0].mxu0
  %v475 = vadd.f32 %v84, %v474
  %v476 = vpop.f32.mrb[0].mxu0
  %477 = vmatprep.mubr.f32.mxu0 0.0
  %478 = vmatmul.mubr.f32.gmra.mrb[0].mxu0 %v168
  %v479 = vpop.f32.mrb[0].mxu0
  %v480 = vadd.f32 %v84, %v479
  %v481 = vpop.f32.mrb[0].mxu0
  %482 = vmatprep.mubr.f32.mxu0 0.0
  %483 = vmatmul.mubr.f32.gmra.mrb[0].mxu0 %v171
  %v484 = vpop.f32.mrb[0].mxu0
  %v485 = vadd.f32 %v84, %v484
  %v486 = vpop.f32.mrb[0].mxu0
  %487 = vmatprep.mubr.f32.mxu0 0.0
  %488 = vmatmul.mubr.f32.gmra.mrb[0].mxu0 %v174
  %v489 = vpop.f32.mrb[0].mxu0
  %v490 = vadd.f32 %v84, %v489
  %v491 = vpop.f32.mrb[0].mxu0
  %492 = vmatprep.mubr.f32.mxu0 0.0
  %493 = vmatmul.mubr.f32.gmra.mrb[0].mxu0 %v177
  %v494 = vpop.f32.mrb[0].mxu0
  %v495 = vadd.f32 %v84, %v494
  %v496 = vpop.f32.mrb[0].mxu0
  %497 = vmatprep.mubr.f32.mxu0 0.0
  %498 = vmatmul.mubr.f32.gmra.mrb[0].mxu0 %v180
  %v499 = vpop.f32.mrb[0].mxu0
  %v500 = vadd.f32 %v84, %v499
  %v501 = vpop.f32.mrb[0].mxu0
  %502 = vmatprep.mubr.f32.mxu0 0.0
  %503 = vmatmul.mubr.f32.gmra.mrb[0].mxu0 %v183
  %v504 = vpop.f32.mrb[0].mxu0
  %v505 = vadd.f32 %v84, %v504
  %v506 = vpop.f32.mrb[0].mxu0
  %507 = vmatprep.mubr.f32.mxu0 0.0
  %508 = vmatmul.mubr.f32.gmra.mrb[0].mxu0 %v186
  %v509 = vpop.f32.mrb[0].mxu0
  %v510 = vadd.f32 %v84, %v509
  %v511 = vpop.f32.mrb[0].mxu0
  %512 = vmatprep.mubr.f32.mxu0 0.0
  %513 = vmatmul.mubr.f32.gmra.mrb[0].mxu0 %v189
  %v514 = vpop.f32.mrb[0].mxu0
  %v515 = vadd.f32 %v84, %v514
  %v516 = vpop.f32.mrb[0].mxu0
  %517 = vmatprep.mubr.f32.mxu0 0.0
  %518 = vmatmul.mubr.f32.gmra.mrb[0].mxu0 %v192
  %v519 = vpop.f32.mrb[0].mxu0
  %v520 = vadd.f32 %v84, %v519
  %v521 = vpop.f32.mrb[0].mxu0
  %522 = vmatprep.mubr.f32.mxu0 0.0
  %523 = vmatmul.mubr.f32.gmra.mrb[0].mxu0 %v195
  %v524 = vpop.f32.mrb[0].mxu0
  %v525 = vadd.f32 %v84, %v524
  %v526 = vpop.f32.mrb[0].mxu0
  %527 = vmatprep.mubr.f32.mxu0 0.0
  %528 = vmatmul.mubr.f32.gmra.mrb[0].mxu0 %v198
  %v529 = vpop.f32.mrb[0].mxu0
  %v530 = vadd.f32 %v84, %v529
  %v531 = vpop.f32.mrb[0].mxu0
  %532 = vmatprep.mubr.f32.mxu0 0.0
  %533 = vmatmul.mubr.f32.gmra.mrb[0].mxu0 %v201
  %v534 = vpop.f32.mrb[0].mxu0
  %v535 = vadd.f32 %v84, %v534
  %v536 = vpop.f32.mrb[0].mxu0
  %537 = vmatprep.mubr.f32.mxu0 0.0
  %538 = vmatmul.mubr.f32.gmra.mrb[0].mxu0 %v204
  %v539 = vpop.f32.mrb[0].mxu0
  %v540 = vadd.f32 %v84, %v539
  %v541 = vpop.f32.mrb[0].mxu0
  %542 = vmatprep.mubr.f32.mxu0 0.0
  %543 = vmatmul.mubr.f32.gmra.mrb[0].mxu0 %v207
  %v544 = vpop.f32.mrb[0].mxu0
  %v545 = vadd.f32 %v84, %v544
  %v546 = vpop.f32.mrb[0].mxu0
  %547 = vmatprep.mubr.f32.mxu0 0.0
  %548 = vmatmul.mubr.f32.gmra.mrb[0].mxu0 %v210
  %v549 = vpop.f32.mrb[0].mxu0
  %v550 = vadd.f32 %v84, %v549
  %v551 = vpop.f32.mrb[0].mxu0
  %552 = vmatprep.mubr.f32.mxu0 0.0
  %553 = vmatmul.mubr.f32.gmra.mrb[0].mxu0 %v213
  %v554 = vpop.f32.mrb[0].mxu0
  %v555 = vadd.f32 %v84, %v554
  %v556 = vpop.f32.mrb[0].mxu0
  %557 = vmatprep.mubr.f32.mxu0 0.0
  %558 = vmatmul.mubr.f32.gmra.mrb[0].mxu0 %v216
  %v559 = vpop.f32.mrb[0].mxu0
  %v560 = vadd.f32 %v84, %v559
  %v561 = vpop.f32.mrb[0].mxu0
  %562 = vmatprep.mubr.f32.mxu0 0.0
  %563 = vmatmul.mubr.f32.gmra.mrb[0].mxu0 %v219
  %v564 = vpop.f32.mrb[0].mxu0
  %v565 = vadd.f32 %v84, %v564
  %v566 = vpop.f32.mrb[0].mxu0
  %567 = vmatprep.mubr.f32.mxu0 0.0
  %568 = vmatmul.mubr.f32.gmra.mrb[0].mxu0 %v222
  %v569 = vpop.f32.mrb[0].mxu0
  %v570 = vadd.f32 %v84, %v569
  %v571 = vpop.f32.mrb[0].mxu0
  %572 = vmatprep.mubr.f32.mxu0 0.0
  %573 = vmatmul.mubr.f32.gmra.mrb[0].mxu0 %v225
  %v574 = vpop.f32.mrb[0].mxu0
  %v575 = vadd.f32 %v84, %v574
  %v576 = vpop.f32.mrb[0].mxu0
  %577 = vmatprep.mubr.f32.mxu0 0.0
  %578 = vmatmul.mubr.f32.gmra.mrb[0].mxu0 %v228
  %v579 = vpop.f32.mrb[0].mxu0
  %v580 = vadd.f32 %v84, %v579
  %v581 = vpop.f32.mrb[0].mxu0
  %582 = vmatprep.mubr.f32.mxu0 0.0
  %583 = vmatmul.mubr.f32.gmra.mrb[0].mxu0 %v231
  %v584 = vpop.f32.mrb[0].mxu0
  %v585 = vadd.f32 %v84, %v584
  %v586 = vpop.f32.mrb[0].mxu0
  %587 = vmatprep.mubr.f32.mxu0 0.0
  %588 = vmatmul.mubr.f32.gmra.mrb[0].mxu0 %v234
  %v589 = vpop.f32.mrb[0].mxu0
  %v590 = vadd.f32 %v84, %v589
  %v591 = vpop.f32.mrb[0].mxu0
  %592 = vmatprep.mubr.f32.mxu0 0.0
  %593 = vmatmul.mubr.f32.gmra.mrb[0].mxu0 %v237
  %v594 = vpop.f32.mrb[0].mxu0
  %v595 = vadd.f32 %v84, %v594
  %v596 = vpop.f32.mrb[0].mxu0
  %597 = vmatprep.mubr.f32.mxu0 0.0
  %598 = vmatmul.mubr.f32.gmra.mrb[0].mxu0 %v240
  %v599 = vpop.f32.mrb[0].mxu0
  %v600 = vadd.f32 %v84, %v599
  %v601 = vpop.f32.mrb[0].mxu0
  %602 = vmatprep.mubr.f32.mxu0 0.0
  %603 = vmatmul.mubr.f32.gmra.mrb[0].mxu0 %v243
  %v604 = vpop.f32.mrb[0].mxu0
  %v605 = vadd.f32 %v84, %v604
  %v606 = vpop.f32.mrb[0].mxu0
  %607 = vmatprep.mubr.f32.mxu0 0.0
  %608 = vmatmul.mubr.f32.gmra.mrb[0].mxu0 %v246
  %v609 = vpop.f32.mrb[0].mxu0
  %v610 = vadd.f32 %v84, %v609
  %v611 = vpop.f32.mrb[0].mxu0
  %612 = vmatprep.mubr.f32.mxu0 0.0
  %613 = vmatmul.mubr.f32.gmra.mrb[0].mxu0 %v249
  %v614 = vpop.f32.mrb[0].mxu0
  %v615 = vadd.f32 %v84, %v614
  %v616 = vpop.f32.mrb[0].mxu0
  %617 = vmatprep.mubr.f32.mxu0 0.0
  %618 = vmatmul.mubr.f32.gmra.mrb[0].mxu0 %v252
  %v619 = vpop.f32.mrb[0].mxu0
  %v620 = vadd.f32 %v84, %v619
  %v621 = vpop.f32.mrb[0].mxu0
  %622 = vmatprep.mubr.f32.mxu0 0.0
  %623 = vmatmul.mubr.f32.gmra.mrb[0].mxu0 %v255
  %v624 = vpop.f32.mrb[0].mxu0
  %v625 = vadd.f32 %v84, %v624
  %v626 = vpop.f32.mrb[0].mxu0
  %627 = vmatprep.mubr.f32.mxu0 0.0
  %628 = vmatmul.mubr.f32.gmra.mrb[0].mxu0 %v258
  %v629 = vpop.f32.mrb[0].mxu0
  %v630 = vadd.f32 %v84, %v629
  %v631 = vpop.f32.mrb[0].mxu0
  %632 = vmatprep.mubr.f32.mxu0 0.0
  %633 = vmatmul.mubr.f32.gmra.mrb[0].mxu0 %v261
  %v634 = vpop.f32.mrb[0].mxu0
  %v635 = vadd.f32 %v84, %v634
  %v636 = vpop.f32.mrb[0].mxu0
  %637 = vmatprep.mubr.f32.mxu0 0.0
  %638 = vmatmul.mubr.f32.gmra.mrb[0].mxu0 %v264
  %v639 = vpop.f32.mrb[0].mxu0
  %v640 = vadd.f32 %v84, %v639
  %v641 = vpop.f32.mrb[0].mxu0
  %642 = vmatprep.mubr.f32.mxu0 0.0
  %643 = vmatmul.mubr.f32.gmra.mrb[0].mxu0 %v267
  %v644 = vpop.f32.mrb[0].mxu0
  %v645 = vadd.f32 %v84, %v644
  %v646 = vpop.f32.mrb[0].mxu0
  %647 = vmatprep.mubr.f32.mxu0 0.0
  %648 = vmatmul.mubr.f32.gmra.mrb[0].mxu0 %v270
  %v649 = vpop.f32.mrb[0].mxu0
  %v650 = vadd.f32 %v84, %v649
  %v651 = vpop.f32.mrb[0].mxu0
  %652 = vmatprep.mubr.f32.mxu0 0.0
  %653 = vmatmul.mubr.f32.gmra.mrb[0].mxu0 %v273
  %v654 = vpop.f32.mrb[0].mxu0
  %v655 = vadd.f32 %v84, %v654
  %v656 = vpop.f32.mrb[0].mxu0
  %657 = vmatprep.mubr.f32.mxu0 0.0
  %658 = vmatmul.mubr.f32.gmra.mrb[0].mxu0 %v276
  %v659 = vpop.f32.mrb[0].mxu0
  %v660 = vadd.f32 %v84, %v659
  %v661 = vpop.f32.mrb[0].mxu0
  %662 = vdwg.mxu0
  %v663 = vmax.f32 %v345, 0.0
  %v664 = vmax.f32 %v350, 0.0
  %v665 = vmax.f32 %v355, 0.0
  %v666 = vmax.f32 %v360, 0.0
  %v667 = vmax.f32 %v365, 0.0
  %v668 = vmax.f32 %v370, 0.0
  %v669 = vmax.f32 %v375, 0.0
  %v670 = vmax.f32 %v380, 0.0
  %v671 = vmax.f32 %v385, 0.0
  %v672 = vmax.f32 %v390, 0.0
  %v673 = vmax.f32 %v395, 0.0
  %v674 = vmax.f32 %v400, 0.0
  %v675 = vmax.f32 %v405, 0.0
  %v676 = vmax.f32 %v410, 0.0
  %v677 = vmax.f32 %v415, 0.0
  %v678 = vmax.f32 %v420, 0.0
  %v679 = vmax.f32 %v425, 0.0
  %v680 = vmax.f32 %v430, 0.0
  %v681 = vmax.f32 %v435, 0.0
  %v682 = vmax.f32 %v440, 0.0
  %v683 = vmax.f32 %v445, 0.0
  %v684 = vmax.f32 %v450, 0.0
  %v685 = vmax.f32 %v455, 0.0
  %v686 = vmax.f32 %v460, 0.0
  %v687 = vmax.f32 %v465, 0.0
  %v688 = vmax.f32 %v470, 0.0
  %v689 = vmax.f32 %v475, 0.0
  %v690 = vmax.f32 %v480, 0.0
  %v691 = vmax.f32 %v485, 0.0
  %v692 = vmax.f32 %v490, 0.0
  %v693 = vmax.f32 %v495, 0.0
  %v694 = vmax.f32 %v500, 0.0
  %v695 = vmax.f32 %v505, 0.0
  %v696 = vmax.f32 %v510, 0.0
  %v697 = vmax.f32 %v515, 0.0
  %v698 = vmax.f32 %v520, 0.0
  %v699 = vmax.f32 %v525, 0.0
  %v700 = vmax.f32 %v530, 0.0
  %v701 = vmax.f32 %v535, 0.0
  %v702 = vmax.f32 %v540, 0.0
  %v703 = vmax.f32 %v545, 0.0
  %v704 = vmax.f32 %v550, 0.0
  %v705 = vmax.f32 %v555, 0.0
  %v706 = vmax.f32 %v560, 0.0
  %v707 = vmax.f32 %v565, 0.0
  %v708 = vmax.f32 %v570, 0.0
  %v709 = vmax.f32 %v575, 0.0
  %v710 = vmax.f32 %v580, 0.0
  %v711 = vmax.f32 %v585, 0.0
  %v712 = vmax.f32 %v590, 0.0
  %v713 = vmax.f32 %v595, 0.0
  %v714 = vmax.f32 %v600, 0.0
  %v715 = vmax.f32 %v605, 0.0
  %v716 = vmax.f32 %v610, 0.0
  %v717 = vmax.f32 %v615, 0.0
  %v718 = vmax.f32 %v620, 0.0
  %v719 = vmax.f32 %v625, 0.0
  %v720 = vmax.f32 %v630, 0.0
  %v721 = vmax.f32 %v635, 0.0
  %v722 = vmax.f32 %v640, 0.0
  %v723 = vmax.f32 %v645, 0.0
  %v724 = vmax.f32 %v650, 0.0
  %v725 = vmax.f32 %v655, 0.0
  %v726 = vmax.f32 %v660, 0.0
  %v727 = vld [vmem:[%s2 + $0x18] sm:$0xff]
  %v728 = vld [vmem:[%s2 + $0x20] sm:$0xff]
  %v729 = vld [vmem:[%s2 + $0x28] sm:$0xff]
  %v730 = vld [vmem:[%s2 + $0x30] sm:$0xff]
  %vm731 = vcmask 64512
  %v733 = vsel %vm731, %v679, 0
  %v736 = vsel %vm731, %v680, 0
  %v739 = vsel %vm731, %v681, 0
  %v742 = vsel %vm731, %v682, 0
  %v745 = vsel %vm731, %v683, 0
  %v748 = vsel %vm731, %v684, 0
  %v751 = vsel %vm731, %v685, 0
  %v754 = vsel %vm731, %v686, 0
  %v757 = vsel %vm731, %v687, 0
  %v760 = vsel %vm731, %v688, 0
  %v763 = vsel %vm731, %v689, 0
  %v766 = vsel %vm731, %v690, 0
  %v769 = vsel %vm731, %v691, 0
  %v772 = vsel %vm731, %v692, 0
  %v775 = vsel %vm731, %v693, 0
  %v778 = vsel %vm731, %v694, 0
  %780 = vmatprep.subr.mxu0 0.0
  %781 = vmatpush1.msra.mxu0 %v728
  %782 = vmatprep.subr.mxu0 0.0
  %783 = vmatpush1.msra.mxu0 0.0
  %784 = vmatprep.subr.mxu0 0.0
  %785 = vmatpush1.msra.mxu0 0.0
  %786 = vmatprep.subr.mxu0 0.0
  %787 = vmatpush1.msra.mxu0 0.0
  %788 = vmatprep.subr.mxu0 0.0
  %789 = vmatpush1.msra.mxu0 0.0
  %790 = vmatprep.subr.mxu0 0.0
  %791 = vmatpush1.msra.mxu0 0.0
  %792 = vmatprep.subr.mxu0 0.0
  %793 = vmatpush1.msra.mxu0 0.0
  %794 = vmatprep.subr.mxu0 0.0
  %795 = vmatpush1.msra.mxu0 0.0
  %796 = vmatprep.subr.mxu0 0.0
  %797 = vmatpush1.msra.mxu0 0.0
  %798 = vmatprep.subr.mxu0 0.0
  %799 = vmatpush1.msra.mxu0 0.0
  %800 = vmatprep.subr.mxu0 0.0
  %801 = vmatpush1.msra.mxu0 0.0
  %802 = vmatprep.subr.mxu0 0.0
  %803 = vmatpush1.msra.mxu0 0.0
  %804 = vmatprep.subr.mxu0 0.0
  %805 = vmatpush1.msra.mxu0 0.0
  %806 = vmatprep.subr.mxu0 0.0
  %807 = vmatpush1.msra.mxu0 0.0
  %808 = vmatprep.subr.mxu0 0.0
  %809 = vmatpush1.msra.mxu0 0.0
  %810 = vmatprep.subr.mxu0 0.0
  %811 = vmatpush1.msra.mxu0 0.0
  %812 = vmatprep.subr.mxu0 0.0
  %813 = vmatpush1.msra.mxu0 0.0
  %814 = vmatprep.subr.mxu0 0.0
  %815 = vmatpush1.msra.mxu0 0.0
  %816 = vmatprep.subr.mxu0 0.0
  %817 = vmatpush1.msra.mxu0 0.0
  %818 = vmatprep.subr.mxu0 0.0
  %819 = vmatpush1.msra.mxu0 0.0
  %820 = vmatprep.subr.mxu0 0.0
  %821 = vmatpush1.msra.mxu0 0.0
  %822 = vmatprep.subr.mxu0 0.0
  %823 = vmatpush1.msra.mxu0 0.0
  %824 = vmatprep.subr.mxu0 0.0
  %825 = vmatpush1.msra.mxu0 0.0
  %826 = vmatprep.subr.mxu0 0.0
  %827 = vmatpush1.msra.mxu0 0.0
  %828 = vmatprep.subr.mxu0 0.0
  %829 = vmatpush1.msra.mxu0 0.0
  %830 = vmatprep.subr.mxu0 0.0
  %831 = vmatpush1.msra.mxu0 0.0
  %832 = vmatprep.subr.mxu0 0.0
  %833 = vmatpush1.msra.mxu0 0.0
  %834 = vmatprep.subr.mxu0 0.0
  %835 = vmatpush1.msra.mxu0 0.0
  %836 = vmatprep.subr.mxu0 0.0
  %837 = vmatpush1.msra.mxu0 0.0
  %838 = vmatprep.subr.mxu0 0.0
  %839 = vmatpush1.msra.mxu0 0.0
  %840 = vmatprep.subr.mxu0 0.0
  %841 = vmatpush1.msra.mxu0 0.0
  %842 = vmatprep.subr.mxu0 0.0
  %843 = vmatpush1.msra.mxu0 0.0
  %844 = vmatprep.mubr.f32.mxu0 0.0
  %845 = vmatmul.mubr.f32.gmra.mrb[0].mxu0 %v733
  %v846 = vpop.f32.mrb[0].mxu0
  %v847 = vadd.f32 0.0, %v846
  %v848 = vpop.f32.mrb[0].mxu0
  %849 = vmatprep.mubr.f32.mxu0 0.0
  %850 = vmatmul.mubr.f32.gmra.mrb[0].mxu0 %v736
  %v851 = vpop.f32.mrb[0].mxu0
  %v852 = vadd.f32 0.0, %v851
  %v853 = vpop.f32.mrb[0].mxu0
  %854 = vmatprep.mubr.f32.mxu0 0.0
  %855 = vmatmul.mubr.f32.gmra.mrb[0].mxu0 %v739
  %v856 = vpop.f32.mrb[0].mxu0
  %v857 = vadd.f32 0.0, %v856
  %v858 = vpop.f32.mrb[0].mxu0
  %859 = vmatprep.mubr.f32.mxu0 0.0
  %860 = vmatmul.mubr.f32.gmra.mrb[0].mxu0 %v742
  %v861 = vpop.f32.mrb[0].mxu0
  %v862 = vadd.f32 0.0, %v861
  %v863 = vpop.f32.mrb[0].mxu0
  %864 = vmatprep.mubr.f32.mxu0 0.0
  %865 = vmatmul.mubr.f32.gmra.mrb[0].mxu0 %v745
  %v866 = vpop.f32.mrb[0].mxu0
  %v867 = vadd.f32 0.0, %v866
  %v868 = vpop.f32.mrb[0].mxu0
  %869 = vmatprep.mubr.f32.mxu0 0.0
  %870 = vmatmul.mubr.f32.gmra.mrb[0].mxu0 %v748
  %v871 = vpop.f32.mrb[0].mxu0
  %v872 = vadd.f32 0.0, %v871
  %v873 = vpop.f32.mrb[0].mxu0
  %874 = vmatprep.mubr.f32.mxu0 0.0
  %875 = vmatmul.mubr.f32.gmra.mrb[0].mxu0 %v751
  %v876 = vpop.f32.mrb[0].mxu0
  %v877 = vadd.f32 0.0, %v876
  %v878 = vpop.f32.mrb[0].mxu0
  %879 = vmatprep.mubr.f32.mxu0 0.0
  %880 = vmatmul.mubr.f32.gmra.mrb[0].mxu0 %v754
  %v881 = vpop.f32.mrb[0].mxu0
  %v882 = vadd.f32 0.0, %v881
  %v883 = vpop.f32.mrb[0].mxu0
  %884 = vmatprep.mubr.f32.mxu0 0.0
  %885 = vmatmul.mubr.f32.gmra.mrb[0].mxu0 %v757
  %v886 = vpop.f32.mrb[0].mxu0
  %v887 = vadd.f32 0.0, %v886
  %v888 = vpop.f32.mrb[0].mxu0
  %889 = vmatprep.mubr.f32.mxu0 0.0
  %890 = vmatmul.mubr.f32.gmra.mrb[0].mxu0 %v760
  %v891 = vpop.f32.mrb[0].mxu0
  %v892 = vadd.f32 0.0, %v891
  %v893 = vpop.f32.mrb[0].mxu0
  %894 = vmatprep.mubr.f32.mxu0 0.0
  %895 = vmatmul.mubr.f32.gmra.mrb[0].mxu0 %v763
  %v896 = vpop.f32.mrb[0].mxu0
  %v897 = vadd.f32 0.0, %v896
  %v898 = vpop.f32.mrb[0].mxu0
  %899 = vmatprep.mubr.f32.mxu0 0.0
  %900 = vmatmul.mubr.f32.gmra.mrb[0].mxu0 %v766
  %v901 = vpop.f32.mrb[0].mxu0
  %v902 = vadd.f32 0.0, %v901
  %v903 = vpop.f32.mrb[0].mxu0
  %904 = vmatprep.mubr.f32.mxu0 0.0
  %905 = vmatmul.mubr.f32.gmra.mrb[0].mxu0 %v769
  %v906 = vpop.f32.mrb[0].mxu0
  %v907 = vadd.f32 0.0, %v906
  %v908 = vpop.f32.mrb[0].mxu0
  %909 = vmatprep.mubr.f32.mxu0 0.0
  %910 = vmatmul.mubr.f32.gmra.mrb[0].mxu0 %v772
  %v911 = vpop.f32.mrb[0].mxu0
  %v912 = vadd.f32 0.0, %v911
  %v913 = vpop.f32.mrb[0].mxu0
  %914 = vmatprep.mubr.f32.mxu0 0.0
  %915 = vmatmul.mubr.f32.gmra.mrb[0].mxu0 %v775
  %v916 = vpop.f32.mrb[0].mxu0
  %v917 = vadd.f32 0.0, %v916
  %v918 = vpop.f32.mrb[0].mxu0
  %919 = vmatprep.mubr.f32.mxu0 0.0
  %920 = vmatmul.mubr.f32.gmra.mrb[0].mxu0 %v778
  %v921 = vpop.f32.mrb[0].mxu0
  %v922 = vadd.f32 0.0, %v921
  %v923 = vpop.f32.mrb[0].mxu0
  %924 = vdwg.mxu0
  %v926 = vsel %vm731, %v663, 0
  %v929 = vsel %vm731, %v664, 0
  %v932 = vsel %vm731, %v665, 0
  %v935 = vsel %vm731, %v666, 0
  %v938 = vsel %vm731, %v667, 0
  %v941 = vsel %vm731, %v668, 0
  %v944 = vsel %vm731, %v669, 0
  %v947 = vsel %vm731, %v670, 0
  %v950 = vsel %vm731, %v671, 0
  %v953 = vsel %vm731, %v672, 0
  %v956 = vsel %vm731, %v673, 0
  %v959 = vsel %vm731, %v674, 0
  %v962 = vsel %vm731, %v675, 0
  %v965 = vsel %vm731, %v676, 0
  %v968 = vsel %vm731, %v677, 0
  %v971 = vsel %vm731, %v678, 0
  %973 = vmatprep.subr.mxu0 0.0
  %974 = vmatpush1.msra.mxu0 %v727
  %975 = vmatprep.subr.mxu0 0.0
  %976 = vmatpush1.msra.mxu0 0.0
  %977 = vmatprep.subr.mxu0 0.0
  %978 = vmatpush1.msra.mxu0 0.0
  %979 = vmatprep.subr.mxu0 0.0
  %980 = vmatpush1.msra.mxu0 0.0
  %981 = vmatprep.subr.mxu0 0.0
  %982 = vmatpush1.msra.mxu0 0.0
  %983 = vmatprep.subr.mxu0 0.0
  %984 = vmatpush1.msra.mxu0 0.0
  %985 = vmatprep.subr.mxu0 0.0
  %986 = vmatpush1.msra.mxu0 0.0
  %987 = vmatprep.subr.mxu0 0.0
  %988 = vmatpush1.msra.mxu0 0.0
  %989 = vmatprep.subr.mxu0 0.0
  %990 = vmatpush1.msra.mxu0 0.0
  %991 = vmatprep.subr.mxu0 0.0
  %992 = vmatpush1.msra.mxu0 0.0
  %993 = vmatprep.subr.mxu0 0.0
  %994 = vmatpush1.msra.mxu0 0.0
  %995 = vmatprep.subr.mxu0 0.0
  %996 = vmatpush1.msra.mxu0 0.0
  %997 = vmatprep.subr.mxu0 0.0
  %998 = vmatpush1.msra.mxu0 0.0
  %999 = vmatprep.subr.mxu0 0.0
  %1000 = vmatpush1.msra.mxu0 0.0
  %1001 = vmatprep.subr.mxu0 0.0
  %1002 = vmatpush1.msra.mxu0 0.0
  %1003 = vmatprep.subr.mxu0 0.0
  %1004 = vmatpush1.msra.mxu0 0.0
  %1005 = vmatprep.subr.mxu0 0.0
  %1006 = vmatpush1.msra.mxu0 0.0
  %1007 = vmatprep.subr.mxu0 0.0
  %1008 = vmatpush1.msra.mxu0 0.0
  %1009 = vmatprep.subr.mxu0 0.0
  %1010 = vmatpush1.msra.mxu0 0.0
  %1011 = vmatprep.subr.mxu0 0.0
  %1012 = vmatpush1.msra.mxu0 0.0
  %1013 = vmatprep.subr.mxu0 0.0
  %1014 = vmatpush1.msra.mxu0 0.0
  %1015 = vmatprep.subr.mxu0 0.0
  %1016 = vmatpush1.msra.mxu0 0.0
  %1017 = vmatprep.subr.mxu0 0.0
  %1018 = vmatpush1.msra.mxu0 0.0
  %1019 = vmatprep.subr.mxu0 0.0
  %1020 = vmatpush1.msra.mxu0 0.0
  %1021 = vmatprep.subr.mxu0 0.0
  %1022 = vmatpush1.msra.mxu0 0.0
  %1023 = vmatprep.subr.mxu0 0.0
  %1024 = vmatpush1.msra.mxu0 0.0
  %1025 = vmatprep.subr.mxu0 0.0
  %1026 = vmatpush1.msra.mxu0 0.0
  %1027 = vmatprep.subr.mxu0 0.0
  %1028 = vmatpush1.msra.mxu0 0.0
  %1029 = vmatprep.subr.mxu0 0.0
  %1030 = vmatpush1.msra.mxu0 0.0
  %1031 = vmatprep.subr.mxu0 0.0
  %1032 = vmatpush1.msra.mxu0 0.0
  %1033 = vmatprep.subr.mxu0 0.0
  %1034 = vmatpush1.msra.mxu0 0.0
  %1035 = vmatprep.subr.mxu0 0.0
  %1036 = vmatpush1.msra.mxu0 0.0
  %1037 = vmatprep.mubr.f32.mxu0 0.0
  %1038 = vmatmul.mubr.f32.gmra.mrb[0].mxu0 %v926
  %v1039 = vpop.f32.mrb[0].mxu0
  %v1040 = vadd.f32 %v847, %v1039
  %v1041 = vpop.f32.mrb[0].mxu0
  %1042 = vmatprep.mubr.f32.mxu0 0.0
  %1043 = vmatmul.mubr.f32.gmra.mrb[0].mxu0 %v929
  %v1044 = vpop.f32.mrb[0].mxu0
  %v1045 = vadd.f32 %v852, %v1044
  %v1046 = vpop.f32.mrb[0].mxu0
  %1047 = vmatprep.mubr.f32.mxu0 0.0
  %1048 = vmatmul.mubr.f32.gmra.mrb[0].mxu0 %v932
  %v1049 = vpop.f32.mrb[0].mxu0
  %v1050 = vadd.f32 %v857, %v1049
  %v1051 = vpop.f32.mrb[0].mxu0
  %1052 = vmatprep.mubr.f32.mxu0 0.0
  %1053 = vmatmul.mubr.f32.gmra.mrb[0].mxu0 %v935
  %v1054 = vpop.f32.mrb[0].mxu0
  %v1055 = vadd.f32 %v862, %v1054
  %v1056 = vpop.f32.mrb[0].mxu0
  %1057 = vmatprep.mubr.f32.mxu0 0.0
  %1058 = vmatmul.mubr.f32.gmra.mrb[0].mxu0 %v938
  %v1059 = vpop.f32.mrb[0].mxu0
  %v1060 = vadd.f32 %v867, %v1059
  %v1061 = vpop.f32.mrb[0].mxu0
  %1062 = vmatprep.mubr.f32.mxu0 0.0
  %1063 = vmatmul.mubr.f32.gmra.mrb[0].mxu0 %v941
  %v1064 = vpop.f32.mrb[0].mxu0
  %v1065 = vadd.f32 %v872, %v1064
  %v1066 = vpop.f32.mrb[0].mxu0
  %1067 = vmatprep.mubr.f32.mxu0 0.0
  %1068 = vmatmul.mubr.f32.gmra.mrb[0].mxu0 %v944
  %v1069 = vpop.f32.mrb[0].mxu0
  %v1070 = vadd.f32 %v877, %v1069
  %v1071 = vpop.f32.mrb[0].mxu0
  %1072 = vmatprep.mubr.f32.mxu0 0.0
  %1073 = vmatmul.mubr.f32.gmra.mrb[0].mxu0 %v947
  %v1074 = vpop.f32.mrb[0].mxu0
  %v1075 = vadd.f32 %v882, %v1074
  %v1076 = vpop.f32.mrb[0].mxu0
  %1077 = vmatprep.mubr.f32.mxu0 0.0
  %1078 = vmatmul.mubr.f32.gmra.mrb[0].mxu0 %v950
  %v1079 = vpop.f32.mrb[0].mxu0
  %v1080 = vadd.f32 %v887, %v1079
  %v1081 = vpop.f32.mrb[0].mxu0
  %1082 = vmatprep.mubr.f32.mxu0 0.0
  %1083 = vmatmul.mubr.f32.gmra.mrb[0].mxu0 %v953
  %v1084 = vpop.f32.mrb[0].mxu0
  %v1085 = vadd.f32 %v892, %v1084
  %v1086 = vpop.f32.mrb[0].mxu0
  %1087 = vmatprep.mubr.f32.mxu0 0.0
  %1088 = vmatmul.mubr.f32.gmra.mrb[0].mxu0 %v956
  %v1089 = vpop.f32.mrb[0].mxu0
  %v1090 = vadd.f32 %v897, %v1089
  %v1091 = vpop.f32.mrb[0].mxu0
  %1092 = vmatprep.mubr.f32.mxu0 0.0
  %1093 = vmatmul.mubr.f32.gmra.mrb[0].mxu0 %v959
  %v1094 = vpop.f32.mrb[0].mxu0
  %v1095 = vadd.f32 %v902, %v1094
  %v1096 = vpop.f32.mrb[0].mxu0
  %1097 = vmatprep.mubr.f32.mxu0 0.0
  %1098 = vmatmul.mubr.f32.gmra.mrb[0].mxu0 %v962
  %v1099 = vpop.f32.mrb[0].mxu0
  %v1100 = vadd.f32 %v907, %v1099
  %v1101 = vpop.f32.mrb[0].mxu0
  %1102 = vmatprep.mubr.f32.mxu0 0.0
  %1103 = vmatmul.mubr.f32.gmra.mrb[0].mxu0 %v965
  %v1104 = vpop.f32.mrb[0].mxu0
  %v1105 = vadd.f32 %v912, %v1104
  %v1106 = vpop.f32.mrb[0].mxu0
  %1107 = vmatprep.mubr.f32.mxu0 0.0
  %1108 = vmatmul.mubr.f32.gmra.mrb[0].mxu0 %v968
  %v1109 = vpop.f32.mrb[0].mxu0
  %v1110 = vadd.f32 %v917, %v1109
  %v1111 = vpop.f32.mrb[0].mxu0
  %1112 = vmatprep.mubr.f32.mxu0 0.0
  %1113 = vmatmul.mubr.f32.gmra.mrb[0].mxu0 %v971
  %v1114 = vpop.f32.mrb[0].mxu0
  %v1115 = vadd.f32 %v922, %v1114
  %v1116 = vpop.f32.mrb[0].mxu0
  %1117 = vdwg.mxu0
  %v1119 = vsel %vm731, %v695, 0
  %v1122 = vsel %vm731, %v696, 0
  %v1125 = vsel %vm731, %v697, 0
  %v1128 = vsel %vm731, %v698, 0
  %v1131 = vsel %vm731, %v699, 0
  %v1134 = vsel %vm731, %v700, 0
  %v1137 = vsel %vm731, %v701, 0
  %v1140 = vsel %vm731, %v702, 0
  %v1143 = vsel %vm731, %v703, 0
  %v1146 = vsel %vm731, %v704, 0
  %v1149 = vsel %vm731, %v705, 0
  %v1152 = vsel %vm731, %v706, 0
  %v1155 = vsel %vm731, %v707, 0
  %v1158 = vsel %vm731, %v708, 0
  %v1161 = vsel %vm731, %v709, 0
  %v1164 = vsel %vm731, %v710, 0
  %1166 = vmatprep.subr.mxu0 0.0
  %1167 = vmatpush1.msra.mxu0 %v729
  %1168 = vmatprep.subr.mxu0 0.0
  %1169 = vmatpush1.msra.mxu0 0.0
  %1170 = vmatprep.subr.mxu0 0.0
  %1171 = vmatpush1.msra.mxu0 0.0
  %1172 = vmatprep.subr.mxu0 0.0
  %1173 = vmatpush1.msra.mxu0 0.0
  %1174 = vmatprep.subr.mxu0 0.0
  %1175 = vmatpush1.msra.mxu0 0.0
  %1176 = vmatprep.subr.mxu0 0.0
  %1177 = vmatpush1.msra.mxu0 0.0
  %1178 = vmatprep.subr.mxu0 0.0
  %1179 = vmatpush1.msra.mxu0 0.0
  %1180 = vmatprep.subr.mxu0 0.0
  %1181 = vmatpush1.msra.mxu0 0.0
  %1182 = vmatprep.subr.mxu0 0.0
  %1183 = vmatpush1.msra.mxu0 0.0
  %1184 = vmatprep.subr.mxu0 0.0
  %1185 = vmatpush1.msra.mxu0 0.0
  %1186 = vmatprep.subr.mxu0 0.0
  %1187 = vmatpush1.msra.mxu0 0.0
  %1188 = vmatprep.subr.mxu0 0.0
  %1189 = vmatpush1.msra.mxu0 0.0
  %1190 = vmatprep.subr.mxu0 0.0
  %1191 = vmatpush1.msra.mxu0 0.0
  %1192 = vmatprep.subr.mxu0 0.0
  %1193 = vmatpush1.msra.mxu0 0.0
  %1194 = vmatprep.subr.mxu0 0.0
  %1195 = vmatpush1.msra.mxu0 0.0
  %1196 = vmatprep.subr.mxu0 0.0
  %1197 = vmatpush1.msra.mxu0 0.0
  %1198 = vmatprep.subr.mxu0 0.0
  %1199 = vmatpush1.msra.mxu0 0.0
  %1200 = vmatprep.subr.mxu0 0.0
  %1201 = vmatpush1.msra.mxu0 0.0
  %1202 = vmatprep.subr.mxu0 0.0
  %1203 = vmatpush1.msra.mxu0 0.0
  %1204 = vmatprep.subr.mxu0 0.0
  %1205 = vmatpush1.msra.mxu0 0.0
  %1206 = vmatprep.subr.mxu0 0.0
  %1207 = vmatpush1.msra.mxu0 0.0
  %1208 = vmatprep.subr.mxu0 0.0
  %1209 = vmatpush1.msra.mxu0 0.0
  %1210 = vmatprep.subr.mxu0 0.0
  %1211 = vmatpush1.msra.mxu0 0.0
  %1212 = vmatprep.subr.mxu0 0.0
  %1213 = vmatpush1.msra.mxu0 0.0
  %1214 = vmatprep.subr.mxu0 0.0
  %1215 = vmatpush1.msra.mxu0 0.0
  %1216 = vmatprep.subr.mxu0 0.0
  %1217 = vmatpush1.msra.mxu0 0.0
  %1218 = vmatprep.subr.mxu0 0.0
  %1219 = vmatpush1.msra.mxu0 0.0
  %1220 = vmatprep.subr.mxu0 0.0
  %1221 = vmatpush1.msra.mxu0 0.0
  %1222 = vmatprep.subr.mxu0 0.0
  %1223 = vmatpush1.msra.mxu0 0.0
  %1224 = vmatprep.subr.mxu0 0.0
  %1225 = vmatpush1.msra.mxu0 0.0
  %1226 = vmatprep.subr.mxu0 0.0
  %1227 = vmatpush1.msra.mxu0 0.0
  %1228 = vmatprep.subr.mxu0 0.0
  %1229 = vmatpush1.msra.mxu0 0.0
  %1230 = vmatprep.mubr.f32.mxu0 0.0
  %1231 = vmatmul.mubr.f32.gmra.mrb[0].mxu0 %v1119
  %v1232 = vpop.f32.mrb[0].mxu0
  %v1233 = vadd.f32 0.0, %v1232
  %v1234 = vpop.f32.mrb[0].mxu0
  %1235 = vmatprep.mubr.f32.mxu0 0.0
  %1236 = vmatmul.mubr.f32.gmra.mrb[0].mxu0 %v1122
  %v1237 = vpop.f32.mrb[0].mxu0
  %v1238 = vadd.f32 0.0, %v1237
  %v1239 = vpop.f32.mrb[0].mxu0
  %1240 = vmatprep.mubr.f32.mxu0 0.0
  %1241 = vmatmul.mubr.f32.gmra.mrb[0].mxu0 %v1125
  %v1242 = vpop.f32.mrb[0].mxu0
  %v1243 = vadd.f32 0.0, %v1242
  %v1244 = vpop.f32.mrb[0].mxu0
  %1245 = vmatprep.mubr.f32.mxu0 0.0
  %1246 = vmatmul.mubr.f32.gmra.mrb[0].mxu0 %v1128
  %v1247 = vpop.f32.mrb[0].mxu0
  %v1248 = vadd.f32 0.0, %v1247
  %v1249 = vpop.f32.mrb[0].mxu0
  %1250 = vmatprep.mubr.f32.mxu0 0.0
  %1251 = vmatmul.mubr.f32.gmra.mrb[0].mxu0 %v1131
  %v1252 = vpop.f32.mrb[0].mxu0
  %v1253 = vadd.f32 0.0, %v1252
  %v1254 = vpop.f32.mrb[0].mxu0
  %1255 = vmatprep.mubr.f32.mxu0 0.0
  %1256 = vmatmul.mubr.f32.gmra.mrb[0].mxu0 %v1134
  %v1257 = vpop.f32.mrb[0].mxu0
  %v1258 = vadd.f32 0.0, %v1257
  %v1259 = vpop.f32.mrb[0].mxu0
  %1260 = vmatprep.mubr.f32.mxu0 0.0
  %1261 = vmatmul.mubr.f32.gmra.mrb[0].mxu0 %v1137
  %v1262 = vpop.f32.mrb[0].mxu0
  %v1263 = vadd.f32 0.0, %v1262
  %v1264 = vpop.f32.mrb[0].mxu0
  %1265 = vmatprep.mubr.f32.mxu0 0.0
  %1266 = vmatmul.mubr.f32.gmra.mrb[0].mxu0 %v1140
  %v1267 = vpop.f32.mrb[0].mxu0
  %v1268 = vadd.f32 0.0, %v1267
  %v1269 = vpop.f32.mrb[0].mxu0
  %1270 = vmatprep.mubr.f32.mxu0 0.0
  %1271 = vmatmul.mubr.f32.gmra.mrb[0].mxu0 %v1143
  %v1272 = vpop.f32.mrb[0].mxu0
  %v1273 = vadd.f32 0.0, %v1272
  %v1274 = vpop.f32.mrb[0].mxu0
  %1275 = vmatprep.mubr.f32.mxu0 0.0
  %1276 = vmatmul.mubr.f32.gmra.mrb[0].mxu0 %v1146
  %v1277 = vpop.f32.mrb[0].mxu0
  %v1278 = vadd.f32 0.0, %v1277
  %v1279 = vpop.f32.mrb[0].mxu0
  %1280 = vmatprep.mubr.f32.mxu0 0.0
  %1281 = vmatmul.mubr.f32.gmra.mrb[0].mxu0 %v1149
  %v1282 = vpop.f32.mrb[0].mxu0
  %v1283 = vadd.f32 0.0, %v1282
  %v1284 = vpop.f32.mrb[0].mxu0
  %1285 = vmatprep.mubr.f32.mxu0 0.0
  %1286 = vmatmul.mubr.f32.gmra.mrb[0].mxu0 %v1152
  %v1287 = vpop.f32.mrb[0].mxu0
  %v1288 = vadd.f32 0.0, %v1287
  %v1289 = vpop.f32.mrb[0].mxu0
  %1290 = vmatprep.mubr.f32.mxu0 0.0
  %1291 = vmatmul.mubr.f32.gmra.mrb[0].mxu0 %v1155
  %v1292 = vpop.f32.mrb[0].mxu0
  %v1293 = vadd.f32 0.0, %v1292
  %v1294 = vpop.f32.mrb[0].mxu0
  %1295 = vmatprep.mubr.f32.mxu0 0.0
  %1296 = vmatmul.mubr.f32.gmra.mrb[0].mxu0 %v1158
  %v1297 = vpop.f32.mrb[0].mxu0
  %v1298 = vadd.f32 0.0, %v1297
  %v1299 = vpop.f32.mrb[0].mxu0
  %1300 = vmatprep.mubr.f32.mxu0 0.0
  %1301 = vmatmul.mubr.f32.gmra.mrb[0].mxu0 %v1161
  %v1302 = vpop.f32.mrb[0].mxu0
  %v1303 = vadd.f32 0.0, %v1302
  %v1304 = vpop.f32.mrb[0].mxu0
  %1305 = vmatprep.mubr.f32.mxu0 0.0
  %1306 = vmatmul.mubr.f32.gmra.mrb[0].mxu0 %v1164
  %v1307 = vpop.f32.mrb[0].mxu0
  %v1308 = vadd.f32 0.0, %v1307
  %v1309 = vpop.f32.mrb[0].mxu0
  %1310 = vdwg.mxu0
  %v1311 = vadd.f32 %v1040, %v1233
  %v1312 = vadd.f32 %v1045, %v1238
  %v1313 = vadd.f32 %v1050, %v1243
  %v1314 = vadd.f32 %v1055, %v1248
  %v1315 = vadd.f32 %v1060, %v1253
  %v1316 = vadd.f32 %v1065, %v1258
  %v1317 = vadd.f32 %v1070, %v1263
  %v1318 = vadd.f32 %v1075, %v1268
  %v1319 = vadd.f32 %v1080, %v1273
  %v1320 = vadd.f32 %v1085, %v1278
  %v1321 = vadd.f32 %v1090, %v1283
  %v1322 = vadd.f32 %v1095, %v1288
  %v1323 = vadd.f32 %v1100, %v1293
  %v1324 = vadd.f32 %v1105, %v1298
  %v1325 = vadd.f32 %v1110, %v1303
  %v1326 = vadd.f32 %v1115, %v1308
  %v1328 = vsel %vm731, %v711, 0
  %v1331 = vsel %vm731, %v712, 0
  %v1334 = vsel %vm731, %v713, 0
  %v1337 = vsel %vm731, %v714, 0
  %v1340 = vsel %vm731, %v715, 0
  %v1343 = vsel %vm731, %v716, 0
  %v1346 = vsel %vm731, %v717, 0
  %v1349 = vsel %vm731, %v718, 0
  %v1352 = vsel %vm731, %v719, 0
  %v1355 = vsel %vm731, %v720, 0
  %v1358 = vsel %vm731, %v721, 0
  %v1361 = vsel %vm731, %v722, 0
  %v1364 = vsel %vm731, %v723, 0
  %v1367 = vsel %vm731, %v724, 0
  %v1370 = vsel %vm731, %v725, 0
  %v1373 = vsel %vm731, %v726, 0
  %1375 = vmatprep.subr.mxu0 0.0
  %1376 = vmatpush1.msra.mxu0 %v730
  %1377 = vmatprep.subr.mxu0 0.0
  %1378 = vmatpush1.msra.mxu0 0.0
  %1379 = vmatprep.subr.mxu0 0.0
  %1380 = vmatpush1.msra.mxu0 0.0
  %1381 = vmatprep.subr.mxu0 0.0
  %1382 = vmatpush1.msra.mxu0 0.0
  %1383 = vmatprep.subr.mxu0 0.0
  %1384 = vmatpush1.msra.mxu0 0.0
  %1385 = vmatprep.subr.mxu0 0.0
  %1386 = vmatpush1.msra.mxu0 0.0
  %1387 = vmatprep.subr.mxu0 0.0
  %1388 = vmatpush1.msra.mxu0 0.0
  %1389 = vmatprep.subr.mxu0 0.0
  %1390 = vmatpush1.msra.mxu0 0.0
  %1391 = vmatprep.subr.mxu0 0.0
  %1392 = vmatpush1.msra.mxu0 0.0
  %1393 = vmatprep.subr.mxu0 0.0
  %1394 = vmatpush1.msra.mxu0 0.0
  %1395 = vmatprep.subr.mxu0 0.0
  %1396 = vmatpush1.msra.mxu0 0.0
  %1397 = vmatprep.subr.mxu0 0.0
  %1398 = vmatpush1.msra.mxu0 0.0
  %1399 = vmatprep.subr.mxu0 0.0
  %1400 = vmatpush1.msra.mxu0 0.0
  %1401 = vmatprep.subr.mxu0 0.0
  %1402 = vmatpush1.msra.mxu0 0.0
  %1403 = vmatprep.subr.mxu0 0.0
  %1404 = vmatpush1.msra.mxu0 0.0
  %1405 = vmatprep.subr.mxu0 0.0
  %1406 = vmatpush1.msra.mxu0 0.0
  %1407 = vmatprep.subr.mxu0 0.0
  %1408 = vmatpush1.msra.mxu0 0.0
  %1409 = vmatprep.subr.mxu0 0.0
  %1410 = vmatpush1.msra.mxu0 0.0
  %1411 = vmatprep.subr.mxu0 0.0
  %1412 = vmatpush1.msra.mxu0 0.0
  %1413 = vmatprep.subr.mxu0 0.0
  %1414 = vmatpush1.msra.mxu0 0.0
  %1415 = vmatprep.subr.mxu0 0.0
  %1416 = vmatpush1.msra.mxu0 0.0
  %1417 = vmatprep.subr.mxu0 0.0
  %1418 = vmatpush1.msra.mxu0 0.0
  %1419 = vmatprep.subr.mxu0 0.0
  %1420 = vmatpush1.msra.mxu0 0.0
  %1421 = vmatprep.subr.mxu0 0.0
  %1422 = vmatpush1.msra.mxu0 0.0
  %1423 = vmatprep.subr.mxu0 0.0
  %1424 = vmatpush1.msra.mxu0 0.0
  %1425 = vmatprep.subr.mxu0 0.0
  %1426 = vmatpush1.msra.mxu0 0.0
  %1427 = vmatprep.subr.mxu0 0.0
  %1428 = vmatpush1.msra.mxu0 0.0
  %1429 = vmatprep.subr.mxu0 0.0
  %1430 = vmatpush1.msra.mxu0 0.0
  %1431 = vmatprep.subr.mxu0 0.0
  %1432 = vmatpush1.msra.mxu0 0.0
  %1433 = vmatprep.subr.mxu0 0.0
  %1434 = vmatpush1.msra.mxu0 0.0
  %1435 = vmatprep.subr.mxu0 0.0
  %1436 = vmatpush1.msra.mxu0 0.0
  %1437 = vmatprep.subr.mxu0 0.0
  %1438 = vmatpush1.msra.mxu0 0.0
  %1439 = vmatprep.mubr.f32.mxu0 0.0
  %1440 = vmatmul.mubr.f32.gmra.mrb[0].mxu0 %v1328
  %v1441 = vpop.f32.mrb[0].mxu0
  %v1442 = vadd.f32 0.0, %v1441
  %v1443 = vpop.f32.mrb[0].mxu0
  %1444 = vmatprep.mubr.f32.mxu0 0.0
  %1445 = vmatmul.mubr.f32.gmra.mrb[0].mxu0 %v1331
  %v1446 = vpop.f32.mrb[0].mxu0
  %v1447 = vadd.f32 0.0, %v1446
  %v1448 = vpop.f32.mrb[0].mxu0
  %1449 = vmatprep.mubr.f32.mxu0 0.0
  %1450 = vmatmul.mubr.f32.gmra.mrb[0].mxu0 %v1334
  %v1451 = vpop.f32.mrb[0].mxu0
  %v1452 = vadd.f32 0.0, %v1451
  %v1453 = vpop.f32.mrb[0].mxu0
  %1454 = vmatprep.mubr.f32.mxu0 0.0
  %1455 = vmatmul.mubr.f32.gmra.mrb[0].mxu0 %v1337
  %v1456 = vpop.f32.mrb[0].mxu0
  %v1457 = vadd.f32 0.0, %v1456
  %v1458 = vpop.f32.mrb[0].mxu0
  %1459 = vmatprep.mubr.f32.mxu0 0.0
  %1460 = vmatmul.mubr.f32.gmra.mrb[0].mxu0 %v1340
  %v1461 = vpop.f32.mrb[0].mxu0
  %v1462 = vadd.f32 0.0, %v1461
  %v1463 = vpop.f32.mrb[0].mxu0
  %1464 = vmatprep.mubr.f32.mxu0 0.0
  %1465 = vmatmul.mubr.f32.gmra.mrb[0].mxu0 %v1343
  %v1466 = vpop.f32.mrb[0].mxu0
  %v1467 = vadd.f32 0.0, %v1466
  %v1468 = vpop.f32.mrb[0].mxu0
  %1469 = vmatprep.mubr.f32.mxu0 0.0
  %1470 = vmatmul.mubr.f32.gmra.mrb[0].mxu0 %v1346
  %v1471 = vpop.f32.mrb[0].mxu0
  %v1472 = vadd.f32 0.0, %v1471
  %v1473 = vpop.f32.mrb[0].mxu0
  %1474 = vmatprep.mubr.f32.mxu0 0.0
  %1475 = vmatmul.mubr.f32.gmra.mrb[0].mxu0 %v1349
  %v1476 = vpop.f32.mrb[0].mxu0
  %v1477 = vadd.f32 0.0, %v1476
  %v1478 = vpop.f32.mrb[0].mxu0
  %1479 = vmatprep.mubr.f32.mxu0 0.0
  %1480 = vmatmul.mubr.f32.gmra.mrb[0].mxu0 %v1352
  %v1481 = vpop.f32.mrb[0].mxu0
  %v1482 = vadd.f32 0.0, %v1481
  %v1483 = vpop.f32.mrb[0].mxu0
  %1484 = vmatprep.mubr.f32.mxu0 0.0
  %1485 = vmatmul.mubr.f32.gmra.mrb[0].mxu0 %v1355
  %v1486 = vpop.f32.mrb[0].mxu0
  %v1487 = vadd.f32 0.0, %v1486
  %v1488 = vpop.f32.mrb[0].mxu0
  %1489 = vmatprep.mubr.f32.mxu0 0.0
  %1490 = vmatmul.mubr.f32.gmra.mrb[0].mxu0 %v1358
  %v1491 = vpop.f32.mrb[0].mxu0
  %v1492 = vadd.f32 0.0, %v1491
  %v1493 = vpop.f32.mrb[0].mxu0
  %1494 = vmatprep.mubr.f32.mxu0 0.0
  %1495 = vmatmul.mubr.f32.gmra.mrb[0].mxu0 %v1361
  %v1496 = vpop.f32.mrb[0].mxu0
  %v1497 = vadd.f32 0.0, %v1496
  %v1498 = vpop.f32.mrb[0].mxu0
  %1499 = vmatprep.mubr.f32.mxu0 0.0
  %1500 = vmatmul.mubr.f32.gmra.mrb[0].mxu0 %v1364
  %v1501 = vpop.f32.mrb[0].mxu0
  %v1502 = vadd.f32 0.0, %v1501
  %v1503 = vpop.f32.mrb[0].mxu0
  %1504 = vmatprep.mubr.f32.mxu0 0.0
  %1505 = vmatmul.mubr.f32.gmra.mrb[0].mxu0 %v1367
  %v1506 = vpop.f32.mrb[0].mxu0
  %v1507 = vadd.f32 0.0, %v1506
  %v1508 = vpop.f32.mrb[0].mxu0
  %1509 = vmatprep.mubr.f32.mxu0 0.0
  %1510 = vmatmul.mubr.f32.gmra.mrb[0].mxu0 %v1370
  %v1511 = vpop.f32.mrb[0].mxu0
  %v1512 = vadd.f32 0.0, %v1511
  %v1513 = vpop.f32.mrb[0].mxu0
  %1514 = vmatprep.mubr.f32.mxu0 0.0
  %1515 = vmatmul.mubr.f32.gmra.mrb[0].mxu0 %v1373
  %v1516 = vpop.f32.mrb[0].mxu0
  %v1517 = vadd.f32 0.0, %v1516
  %v1518 = vpop.f32.mrb[0].mxu0
  %1519 = vdwg.mxu0
  %v1520 = vadd.f32 %v1311, %v1442
  %v1521 = vadd.f32 %v1312, %v1447
  %v1522 = vadd.f32 %v1313, %v1452
  %v1523 = vadd.f32 %v1314, %v1457
  %v1524 = vadd.f32 %v1315, %v1462
  %v1525 = vadd.f32 %v1316, %v1467
  %v1526 = vadd.f32 %v1317, %v1472
  %v1527 = vadd.f32 %v1318, %v1477
  %v1528 = vadd.f32 %v1319, %v1482
  %v1529 = vadd.f32 %v1320, %v1487
  %v1530 = vadd.f32 %v1321, %v1492
  %v1531 = vadd.f32 %v1322, %v1497
  %v1532 = vadd.f32 %v1323, %v1502
  %v1533 = vadd.f32 %v1324, %v1507
  %v1534 = vadd.f32 %v1325, %v1512
  %v1535 = vadd.f32 %v1326, %v1517
  %v1536 = vld [vmem:[%s2 + $0x38] sm:$0x1]
  %v1537 = vlaneseq
  %v1538 = vshrl.u32 %v1537, 7
  %v1539 = vsub.s32 0, %v1538
  %v1540 = vrot.slane %v1536, %v1539
  %v1541 = vadd.f32 %v1520, %v1540
  %v1542 = vadd.f32 %v1521, %v1540
  %v1543 = vadd.f32 %v1522, %v1540
  %v1544 = vadd.f32 %v1523, %v1540
  %v1545 = vadd.f32 %v1524, %v1540
  %v1546 = vadd.f32 %v1525, %v1540
  %v1547 = vadd.f32 %v1526, %v1540
  %v1548 = vadd.f32 %v1527, %v1540
  %v1549 = vadd.f32 %v1528, %v1540
  %v1550 = vadd.f32 %v1529, %v1540
  %v1551 = vadd.f32 %v1530, %v1540
  %v1552 = vadd.f32 %v1531, %v1540
  %v1553 = vadd.f32 %v1532, %v1540
  %v1554 = vadd.f32 %v1533, %v1540
  %v1555 = vadd.f32 %v1534, %v1540
  %v1556 = vadd.f32 %v1535, %v1540
  %v1557 = vmax.f32 %v1541, 0.0
  %v1558 = vmax.f32 %v1542, 0.0
  %v1559 = vmax.f32 %v1543, 0.0
  %v1560 = vmax.f32 %v1544, 0.0
  %v1561 = vmax.f32 %v1545, 0.0
  %v1562 = vmax.f32 %v1546, 0.0
  %v1563 = vmax.f32 %v1547, 0.0
  %v1564 = vmax.f32 %v1548, 0.0
  %v1565 = vmax.f32 %v1549, 0.0
  %v1566 = vmax.f32 %v1550, 0.0
  %v1567 = vmax.f32 %v1551, 0.0
  %v1568 = vmax.f32 %v1552, 0.0
  %v1569 = vmax.f32 %v1553, 0.0
  %v1570 = vmax.f32 %v1554, 0.0
  %v1571 = vmax.f32 %v1555, 0.0
  %v1572 = vmax.f32 %v1556, 0.0
  %v1573 = vld [vmem:[%s2 + $0x40] sm:$0xff]
  %v1574 = vld [vmem:[%s2 + $0x48] sm:$0xff]
  %v1575 = vld [vmem:[%s2 + $0x50] sm:$0xff]
  %v1576 = vld [vmem:[%s2 + $0x58] sm:$0xff]
  %v1578 = vsel %vm731, %v1561, 0
  %v1581 = vsel %vm731, %v1562, 0
  %v1584 = vsel %vm731, %v1563, 0
  %v1587 = vsel %vm731, %v1564, 0
  %1589 = vmatprep.subr.mxu0 0.0
  %1590 = vmatpush1.msra.mxu0 %v1574
  %1591 = vmatprep.subr.mxu0 0.0
  %1592 = vmatpush1.msra.mxu0 0.0
  %1593 = vmatprep.subr.mxu0 0.0
  %1594 = vmatpush1.msra.mxu0 0.0
  %1595 = vmatprep.subr.mxu0 0.0
  %1596 = vmatpush1.msra.mxu0 0.0
  %1597 = vmatprep.subr.mxu0 0.0
  %1598 = vmatpush1.msra.mxu0 0.0
  %1599 = vmatprep.subr.mxu0 0.0
  %1600 = vmatpush1.msra.mxu0 0.0
  %1601 = vmatprep.subr.mxu0 0.0
  %1602 = vmatpush1.msra.mxu0 0.0
  %1603 = vmatprep.subr.mxu0 0.0
  %1604 = vmatpush1.msra.mxu0 0.0
  %1605 = vmatprep.subr.mxu0 0.0
  %1606 = vmatpush1.msra.mxu0 0.0
  %1607 = vmatprep.subr.mxu0 0.0
  %1608 = vmatpush1.msra.mxu0 0.0
  %1609 = vmatprep.subr.mxu0 0.0
  %1610 = vmatpush1.msra.mxu0 0.0
  %1611 = vmatprep.subr.mxu0 0.0
  %1612 = vmatpush1.msra.mxu0 0.0
  %1613 = vmatprep.subr.mxu0 0.0
  %1614 = vmatpush1.msra.mxu0 0.0
  %1615 = vmatprep.subr.mxu0 0.0
  %1616 = vmatpush1.msra.mxu0 0.0
  %1617 = vmatprep.subr.mxu0 0.0
  %1618 = vmatpush1.msra.mxu0 0.0
  %1619 = vmatprep.subr.mxu0 0.0
  %1620 = vmatpush1.msra.mxu0 0.0
  %1621 = vmatprep.subr.mxu0 0.0
  %1622 = vmatpush1.msra.mxu0 0.0
  %1623 = vmatprep.subr.mxu0 0.0
  %1624 = vmatpush1.msra.mxu0 0.0
  %1625 = vmatprep.subr.mxu0 0.0
  %1626 = vmatpush1.msra.mxu0 0.0
  %1627 = vmatprep.subr.mxu0 0.0
  %1628 = vmatpush1.msra.mxu0 0.0
  %1629 = vmatprep.subr.mxu0 0.0
  %1630 = vmatpush1.msra.mxu0 0.0
  %1631 = vmatprep.subr.mxu0 0.0
  %1632 = vmatpush1.msra.mxu0 0.0
  %1633 = vmatprep.subr.mxu0 0.0
  %1634 = vmatpush1.msra.mxu0 0.0
  %1635 = vmatprep.subr.mxu0 0.0
  %1636 = vmatpush1.msra.mxu0 0.0
  %1637 = vmatprep.subr.mxu0 0.0
  %1638 = vmatpush1.msra.mxu0 0.0
  %1639 = vmatprep.subr.mxu0 0.0
  %1640 = vmatpush1.msra.mxu0 0.0
  %1641 = vmatprep.subr.mxu0 0.0
  %1642 = vmatpush1.msra.mxu0 0.0
  %1643 = vmatprep.subr.mxu0 0.0
  %1644 = vmatpush1.msra.mxu0 0.0
  %1645 = vmatprep.subr.mxu0 0.0
  %1646 = vmatpush1.msra.mxu0 0.0
  %1647 = vmatprep.subr.mxu0 0.0
  %1648 = vmatpush1.msra.mxu0 0.0
  %1649 = vmatprep.subr.mxu0 0.0
  %1650 = vmatpush1.msra.mxu0 0.0
  %1651 = vmatprep.subr.mxu0 0.0
  %1652 = vmatpush1.msra.mxu0 0.0
  %1653 = vmatprep.mubr.f32.mxu0 0.0
  %1654 = vmatmul.mubr.f32.gmra.mrb[0].mxu0 %v1578
  %v1655 = vpop.f32.mrb[0].mxu0
  %v1656 = vadd.f32 0.0, %v1655
  %v1657 = vpop.f32.mrb[0].mxu0
  %1658 = vmatprep.mubr.f32.mxu0 0.0
  %1659 = vmatmul.mubr.f32.gmra.mrb[0].mxu0 %v1581
  %v1660 = vpop.f32.mrb[0].mxu0
  %v1661 = vadd.f32 0.0, %v1660
  %v1662 = vpop.f32.mrb[0].mxu0
  %1663 = vmatprep.mubr.f32.mxu0 0.0
  %1664 = vmatmul.mubr.f32.gmra.mrb[0].mxu0 %v1584
  %v1665 = vpop.f32.mrb[0].mxu0
  %v1666 = vadd.f32 0.0, %v1665
  %v1667 = vpop.f32.mrb[0].mxu0
  %1668 = vmatprep.mubr.f32.mxu0 0.0
  %1669 = vmatmul.mubr.f32.gmra.mrb[0].mxu0 %v1587
  %v1670 = vpop.f32.mrb[0].mxu0
  %v1671 = vadd.f32 0.0, %v1670
  %v1672 = vpop.f32.mrb[0].mxu0
  %1673 = vdwg.mxu0
  %v1675 = vsel %vm731, %v1557, 0
  %v1678 = vsel %vm731, %v1558, 0
  %v1681 = vsel %vm731, %v1559, 0
  %v1684 = vsel %vm731, %v1560, 0
  %1686 = vmatprep.subr.mxu0 0.0
  %1687 = vmatpush1.msra.mxu0 %v1573
  %1688 = vmatprep.subr.mxu0 0.0
  %1689 = vmatpush1.msra.mxu0 0.0
  %1690 = vmatprep.subr.mxu0 0.0
  %1691 = vmatpush1.msra.mxu0 0.0
  %1692 = vmatprep.subr.mxu0 0.0
  %1693 = vmatpush1.msra.mxu0 0.0
  %1694 = vmatprep.subr.mxu0 0.0
  %1695 = vmatpush1.msra.mxu0 0.0
  %1696 = vmatprep.subr.mxu0 0.0
  %1697 = vmatpush1.msra.mxu0 0.0
  %1698 = vmatprep.subr.mxu0 0.0
  %1699 = vmatpush1.msra.mxu0 0.0
  %1700 = vmatprep.subr.mxu0 0.0
  %1701 = vmatpush1.msra.mxu0 0.0
  %1702 = vmatprep.subr.mxu0 0.0
  %1703 = vmatpush1.msra.mxu0 0.0
  %1704 = vmatprep.subr.mxu0 0.0
  %1705 = vmatpush1.msra.mxu0 0.0
  %1706 = vmatprep.subr.mxu0 0.0
  %1707 = vmatpush1.msra.mxu0 0.0
  %1708 = vmatprep.subr.mxu0 0.0
  %1709 = vmatpush1.msra.mxu0 0.0
  %1710 = vmatprep.subr.mxu0 0.0
  %1711 = vmatpush1.msra.mxu0 0.0
  %1712 = vmatprep.subr.mxu0 0.0
  %1713 = vmatpush1.msra.mxu0 0.0
  %1714 = vmatprep.subr.mxu0 0.0
  %1715 = vmatpush1.msra.mxu0 0.0
  %1716 = vmatprep.subr.mxu0 0.0
  %1717 = vmatpush1.msra.mxu0 0.0
  %1718 = vmatprep.subr.mxu0 0.0
  %1719 = vmatpush1.msra.mxu0 0.0
  %1720 = vmatprep.subr.mxu0 0.0
  %1721 = vmatpush1.msra.mxu0 0.0
  %1722 = vmatprep.subr.mxu0 0.0
  %1723 = vmatpush1.msra.mxu0 0.0
  %1724 = vmatprep.subr.mxu0 0.0
  %1725 = vmatpush1.msra.mxu0 0.0
  %1726 = vmatprep.subr.mxu0 0.0
  %1727 = vmatpush1.msra.mxu0 0.0
  %1728 = vmatprep.subr.mxu0 0.0
  %1729 = vmatpush1.msra.mxu0 0.0
  %1730 = vmatprep.subr.mxu0 0.0
  %1731 = vmatpush1.msra.mxu0 0.0
  %1732 = vmatprep.subr.mxu0 0.0
  %1733 = vmatpush1.msra.mxu0 0.0
  %1734 = vmatprep.subr.mxu0 0.0
  %1735 = vmatpush1.msra.mxu0 0.0
  %1736 = vmatprep.subr.mxu0 0.0
  %1737 = vmatpush1.msra.mxu0 0.0
  %1738 = vmatprep.subr.mxu0 0.0
  %1739 = vmatpush1.msra.mxu0 0.0
  %1740 = vmatprep.subr.mxu0 0.0
  %1741 = vmatpush1.msra.mxu0 0.0
  %1742 = vmatprep.subr.mxu0 0.0
  %1743 = vmatpush1.msra.mxu0 0.0
  %1744 = vmatprep.subr.mxu0 0.0
  %1745 = vmatpush1.msra.mxu0 0.0
  %1746 = vmatprep.subr.mxu0 0.0
  %1747 = vmatpush1.msra.mxu0 0.0
  %1748 = vmatprep.subr.mxu0 0.0
  %1749 = vmatpush1.msra.mxu0 0.0
  %1750 = vmatprep.mubr.f32.mxu0 0.0
  %1751 = vmatmul.mubr.f32.gmra.mrb[0].mxu0 %v1675
  %v1752 = vpop.f32.mrb[0].mxu0
  %v1753 = vadd.f32 %v1656, %v1752
  %v1754 = vpop.f32.mrb[0].mxu0
  %1755 = vmatprep.mubr.f32.mxu0 0.0
  %1756 = vmatmul.mubr.f32.gmra.mrb[0].mxu0 %v1678
  %v1757 = vpop.f32.mrb[0].mxu0
  %v1758 = vadd.f32 %v1661, %v1757
  %v1759 = vpop.f32.mrb[0].mxu0
  %1760 = vmatprep.mubr.f32.mxu0 0.0
  %1761 = vmatmul.mubr.f32.gmra.mrb[0].mxu0 %v1681
  %v1762 = vpop.f32.mrb[0].mxu0
  %v1763 = vadd.f32 %v1666, %v1762
  %v1764 = vpop.f32.mrb[0].mxu0
  %1765 = vmatprep.mubr.f32.mxu0 0.0
  %1766 = vmatmul.mubr.f32.gmra.mrb[0].mxu0 %v1684
  %v1767 = vpop.f32.mrb[0].mxu0
  %v1768 = vadd.f32 %v1671, %v1767
  %v1769 = vpop.f32.mrb[0].mxu0
  %1770 = vdwg.mxu0
  %v1772 = vsel %vm731, %v1565, 0
  %v1775 = vsel %vm731, %v1566, 0
  %v1778 = vsel %vm731, %v1567, 0
  %v1781 = vsel %vm731, %v1568, 0
  %1783 = vmatprep.subr.mxu0 0.0
  %1784 = vmatpush1.msra.mxu0 %v1575
  %1785 = vmatprep.subr.mxu0 0.0
  %1786 = vmatpush1.msra.mxu0 0.0
  %1787 = vmatprep.subr.mxu0 0.0
  %1788 = vmatpush1.msra.mxu0 0.0
  %1789 = vmatprep.subr.mxu0 0.0
  %1790 = vmatpush1.msra.mxu0 0.0
  %1791 = vmatprep.subr.mxu0 0.0
  %1792 = vmatpush1.msra.mxu0 0.0
  %1793 = vmatprep.subr.mxu0 0.0
  %1794 = vmatpush1.msra.mxu0 0.0
  %1795 = vmatprep.subr.mxu0 0.0
  %1796 = vmatpush1.msra.mxu0 0.0
  %1797 = vmatprep.subr.mxu0 0.0
  %1798 = vmatpush1.msra.mxu0 0.0
  %1799 = vmatprep.subr.mxu0 0.0
  %1800 = vmatpush1.msra.mxu0 0.0
  %1801 = vmatprep.subr.mxu0 0.0
  %1802 = vmatpush1.msra.mxu0 0.0
  %1803 = vmatprep.subr.mxu0 0.0
  %1804 = vmatpush1.msra.mxu0 0.0
  %1805 = vmatprep.subr.mxu0 0.0
  %1806 = vmatpush1.msra.mxu0 0.0
  %1807 = vmatprep.subr.mxu0 0.0
  %1808 = vmatpush1.msra.mxu0 0.0
  %1809 = vmatprep.subr.mxu0 0.0
  %1810 = vmatpush1.msra.mxu0 0.0
  %1811 = vmatprep.subr.mxu0 0.0
  %1812 = vmatpush1.msra.mxu0 0.0
  %1813 = vmatprep.subr.mxu0 0.0
  %1814 = vmatpush1.msra.mxu0 0.0
  %1815 = vmatprep.subr.mxu0 0.0
  %1816 = vmatpush1.msra.mxu0 0.0
  %1817 = vmatprep.subr.mxu0 0.0
  %1818 = vmatpush1.msra.mxu0 0.0
  %1819 = vmatprep.subr.mxu0 0.0
  %1820 = vmatpush1.msra.mxu0 0.0
  %1821 = vmatprep.subr.mxu0 0.0
  %1822 = vmatpush1.msra.mxu0 0.0
  %1823 = vmatprep.subr.mxu0 0.0
  %1824 = vmatpush1.msra.mxu0 0.0
  %1825 = vmatprep.subr.mxu0 0.0
  %1826 = vmatpush1.msra.mxu0 0.0
  %1827 = vmatprep.subr.mxu0 0.0
  %1828 = vmatpush1.msra.mxu0 0.0
  %1829 = vmatprep.subr.mxu0 0.0
  %1830 = vmatpush1.msra.mxu0 0.0
  %1831 = vmatprep.subr.mxu0 0.0
  %1832 = vmatpush1.msra.mxu0 0.0
  %1833 = vmatprep.subr.mxu0 0.0
  %1834 = vmatpush1.msra.mxu0 0.0
  %1835 = vmatprep.subr.mxu0 0.0
  %1836 = vmatpush1.msra.mxu0 0.0
  %1837 = vmatprep.subr.mxu0 0.0
  %1838 = vmatpush1.msra.mxu0 0.0
  %1839 = vmatprep.subr.mxu0 0.0
  %1840 = vmatpush1.msra.mxu0 0.0
  %1841 = vmatprep.subr.mxu0 0.0
  %1842 = vmatpush1.msra.mxu0 0.0
  %1843 = vmatprep.subr.mxu0 0.0
  %1844 = vmatpush1.msra.mxu0 0.0
  %1845 = vmatprep.subr.mxu0 0.0
  %1846 = vmatpush1.msra.mxu0 0.0
  %1847 = vmatprep.mubr.f32.mxu0 0.0
  %1848 = vmatmul.mubr.f32.gmra.mrb[0].mxu0 %v1772
  %v1849 = vpop.f32.mrb[0].mxu0
  %v1850 = vadd.f32 0.0, %v1849
  %v1851 = vpop.f32.mrb[0].mxu0
  %1852 = vmatprep.mubr.f32.mxu0 0.0
  %1853 = vmatmul.mubr.f32.gmra.mrb[0].mxu0 %v1775
  %v1854 = vpop.f32.mrb[0].mxu0
  %v1855 = vadd.f32 0.0, %v1854
  %v1856 = vpop.f32.mrb[0].mxu0
  %1857 = vmatprep.mubr.f32.mxu0 0.0
  %1858 = vmatmul.mubr.f32.gmra.mrb[0].mxu0 %v1778
  %v1859 = vpop.f32.mrb[0].mxu0
  %v1860 = vadd.f32 0.0, %v1859
  %v1861 = vpop.f32.mrb[0].mxu0
  %1862 = vmatprep.mubr.f32.mxu0 0.0
  %1863 = vmatmul.mubr.f32.gmra.mrb[0].mxu0 %v1781
  %v1864 = vpop.f32.mrb[0].mxu0
  %v1865 = vadd.f32 0.0, %v1864
  %v1866 = vpop.f32.mrb[0].mxu0
  %1867 = vdwg.mxu0
  %v1868 = vadd.f32 %v1753, %v1850
  %v1869 = vadd.f32 %v1758, %v1855
  %v1870 = vadd.f32 %v1763, %v1860
  %v1871 = vadd.f32 %v1768, %v1865
  %v1873 = vsel %vm731, %v1569, 0
  %v1876 = vsel %vm731, %v1570, 0
  %v1879 = vsel %vm731, %v1571, 0
  %v1882 = vsel %vm731, %v1572, 0
  %1884 = vmatprep.subr.mxu0 0.0
  %1885 = vmatpush1.msra.mxu0 %v1576
  %1886 = vmatprep.subr.mxu0 0.0
  %1887 = vmatpush1.msra.mxu0 0.0
  %1888 = vmatprep.subr.mxu0 0.0
  %1889 = vmatpush1.msra.mxu0 0.0
  %1890 = vmatprep.subr.mxu0 0.0
  %1891 = vmatpush1.msra.mxu0 0.0
  %1892 = vmatprep.subr.mxu0 0.0
  %1893 = vmatpush1.msra.mxu0 0.0
  %1894 = vmatprep.subr.mxu0 0.0
  %1895 = vmatpush1.msra.mxu0 0.0
  %1896 = vmatprep.subr.mxu0 0.0
  %1897 = vmatpush1.msra.mxu0 0.0
  %1898 = vmatprep.subr.mxu0 0.0
  %1899 = vmatpush1.msra.mxu0 0.0
  %1900 = vmatprep.subr.mxu0 0.0
  %1901 = vmatpush1.msra.mxu0 0.0
  %1902 = vmatprep.subr.mxu0 0.0
  %1903 = vmatpush1.msra.mxu0 0.0
  %1904 = vmatprep.subr.mxu0 0.0
  %1905 = vmatpush1.msra.mxu0 0.0
  %1906 = vmatprep.subr.mxu0 0.0
  %1907 = vmatpush1.msra.mxu0 0.0
  %1908 = vmatprep.subr.mxu0 0.0
  %1909 = vmatpush1.msra.mxu0 0.0
  %1910 = vmatprep.subr.mxu0 0.0
  %1911 = vmatpush1.msra.mxu0 0.0
  %1912 = vmatprep.subr.mxu0 0.0
  %1913 = vmatpush1.msra.mxu0 0.0
  %1914 = vmatprep.subr.mxu0 0.0
  %1915 = vmatpush1.msra.mxu0 0.0
  %1916 = vmatprep.subr.mxu0 0.0
  %1917 = vmatpush1.msra.mxu0 0.0
  %1918 = vmatprep.subr.mxu0 0.0
  %1919 = vmatpush1.msra.mxu0 0.0
  %1920 = vmatprep.subr.mxu0 0.0
  %1921 = vmatpush1.msra.mxu0 0.0
  %1922 = vmatprep.subr.mxu0 0.0
  %1923 = vmatpush1.msra.mxu0 0.0
  %1924 = vmatprep.subr.mxu0 0.0
  %1925 = vmatpush1.msra.mxu0 0.0
  %1926 = vmatprep.subr.mxu0 0.0
  %1927 = vmatpush1.msra.mxu0 0.0
  %1928 = vmatprep.subr.mxu0 0.0
  %1929 = vmatpush1.msra.mxu0 0.0
  %1930 = vmatprep.subr.mxu0 0.0
  %1931 = vmatpush1.msra.mxu0 0.0
  %1932 = vmatprep.subr.mxu0 0.0
  %1933 = vmatpush1.msra.mxu0 0.0
  %1934 = vmatprep.subr.mxu0 0.0
  %1935 = vmatpush1.msra.mxu0 0.0
  %1936 = vmatprep.subr.mxu0 0.0
  %1937 = vmatpush1.msra.mxu0 0.0
  %1938 = vmatprep.subr.mxu0 0.0
  %1939 = vmatpush1.msra.mxu0 0.0
  %1940 = vmatprep.subr.mxu0 0.0
  %1941 = vmatpush1.msra.mxu0 0.0
  %1942 = vmatprep.subr.mxu0 0.0
  %1943 = vmatpush1.msra.mxu0 0.0
  %1944 = vmatprep.subr.mxu0 0.0
  %1945 = vmatpush1.msra.mxu0 0.0
  %1946 = vmatprep.subr.mxu0 0.0
  %1947 = vmatpush1.msra.mxu0 0.0
  %1948 = vmatprep.mubr.f32.mxu0 0.0
  %1949 = vmatmul.mubr.f32.gmra.mrb[0].mxu0 %v1873
  %v1950 = vpop.f32.mrb[0].mxu0
  %v1951 = vadd.f32 0.0, %v1950
  %v1952 = vpop.f32.mrb[0].mxu0
  %1953 = vmatprep.mubr.f32.mxu0 0.0
  %1954 = vmatmul.mubr.f32.gmra.mrb[0].mxu0 %v1876
  %v1955 = vpop.f32.mrb[0].mxu0
  %v1956 = vadd.f32 0.0, %v1955
  %v1957 = vpop.f32.mrb[0].mxu0
  %1958 = vmatprep.mubr.f32.mxu0 0.0
  %1959 = vmatmul.mubr.f32.gmra.mrb[0].mxu0 %v1879
  %v1960 = vpop.f32.mrb[0].mxu0
  %v1961 = vadd.f32 0.0, %v1960
  %v1962 = vpop.f32.mrb[0].mxu0
  %1963 = vmatprep.mubr.f32.mxu0 0.0
  %1964 = vmatmul.mubr.f32.gmra.mrb[0].mxu0 %v1882
  %v1965 = vpop.f32.mrb[0].mxu0
  %v1966 = vadd.f32 0.0, %v1965
  %v1967 = vpop.f32.mrb[0].mxu0
  %1968 = vdwg.mxu0
  %v1969 = vadd.f32 %v1868, %v1951
  %v1970 = vadd.f32 %v1869, %v1956
  %v1971 = vadd.f32 %v1870, %v1961
  %v1972 = vadd.f32 %v1871, %v1966
  %v1973 = vld [vmem:[%s2 + $0x60] sm:$0x1]
  %v1974 = vlaneseq
  %v1975 = vshrl.u32 %v1974, 7
  %v1976 = vsub.s32 0, %v1975
  %v1977 = vrot.slane %v1973, %v1976
  %v1978 = vadd.f32 %v1969, %v1977
  %v1979 = vadd.f32 %v1970, %v1977
  %v1980 = vadd.f32 %v1971, %v1977
  %v1981 = vadd.f32 %v1972, %v1977
  %v1982 = vmax.f32 %v1978, 0.0
  %v1983 = vmax.f32 %v1979, 0.0
  %v1984 = vmax.f32 %v1980, 0.0
  %v1985 = vmax.f32 %v1981, 0.0
  %v1986 = vld [vmem:[%s2 + $0x68] sm:$0xff]
  %v1987 = vld [vmem:[%s2 + $0x70] sm:$0xff]
  %v1988 = vld [vmem:[%s2 + $0x78] sm:$0xff]
  %v1989 = vld [vmem:[%s2 + $0x80] sm:$0xff]
  %v1991 = vsel %vm731, %v1983, 0
  %1993 = vmatprep.subr.mxu0 0.0
  %1994 = vmatpush1.msra.mxu0 %v1987
  %1995 = vmatprep.subr.mxu0 0.0
  %1996 = vmatpush1.msra.mxu0 0.0
  %1997 = vmatprep.subr.mxu0 0.0
  %1998 = vmatpush1.msra.mxu0 0.0
  %1999 = vmatprep.subr.mxu0 0.0
  %2000 = vmatpush1.msra.mxu0 0.0
  %2001 = vmatprep.subr.mxu0 0.0
  %2002 = vmatpush1.msra.mxu0 0.0
  %2003 = vmatprep.subr.mxu0 0.0
  %2004 = vmatpush1.msra.mxu0 0.0
  %2005 = vmatprep.subr.mxu0 0.0
  %2006 = vmatpush1.msra.mxu0 0.0
  %2007 = vmatprep.subr.mxu0 0.0
  %2008 = vmatpush1.msra.mxu0 0.0
  %2009 = vmatprep.subr.mxu0 0.0
  %2010 = vmatpush1.msra.mxu0 0.0
  %2011 = vmatprep.subr.mxu0 0.0
  %2012 = vmatpush1.msra.mxu0 0.0
  %2013 = vmatprep.subr.mxu0 0.0
  %2014 = vmatpush1.msra.mxu0 0.0
  %2015 = vmatprep.subr.mxu0 0.0
  %2016 = vmatpush1.msra.mxu0 0.0
  %2017 = vmatprep.subr.mxu0 0.0
  %2018 = vmatpush1.msra.mxu0 0.0
  %2019 = vmatprep.subr.mxu0 0.0
  %2020 = vmatpush1.msra.mxu0 0.0
  %2021 = vmatprep.subr.mxu0 0.0
  %2022 = vmatpush1.msra.mxu0 0.0
  %2023 = vmatprep.subr.mxu0 0.0
  %2024 = vmatpush1.msra.mxu0 0.0
  %2025 = vmatprep.subr.mxu0 0.0
  %2026 = vmatpush1.msra.mxu0 0.0
  %2027 = vmatprep.subr.mxu0 0.0
  %2028 = vmatpush1.msra.mxu0 0.0
  %2029 = vmatprep.subr.mxu0 0.0
  %2030 = vmatpush1.msra.mxu0 0.0
  %2031 = vmatprep.subr.mxu0 0.0
  %2032 = vmatpush1.msra.mxu0 0.0
  %2033 = vmatprep.subr.mxu0 0.0
  %2034 = vmatpush1.msra.mxu0 0.0
  %2035 = vmatprep.subr.mxu0 0.0
  %2036 = vmatpush1.msra.mxu0 0.0
  %2037 = vmatprep.subr.mxu0 0.0
  %2038 = vmatpush1.msra.mxu0 0.0
  %2039 = vmatprep.subr.mxu0 0.0
  %2040 = vmatpush1.msra.mxu0 0.0
  %2041 = vmatprep.subr.mxu0 0.0
  %2042 = vmatpush1.msra.mxu0 0.0
  %2043 = vmatprep.subr.mxu0 0.0
  %2044 = vmatpush1.msra.mxu0 0.0
  %2045 = vmatprep.subr.mxu0 0.0
  %2046 = vmatpush1.msra.mxu0 0.0
  %2047 = vmatprep.subr.mxu0 0.0
  %2048 = vmatpush1.msra.mxu0 0.0
  %2049 = vmatprep.subr.mxu0 0.0
  %2050 = vmatpush1.msra.mxu0 0.0
  %2051 = vmatprep.subr.mxu0 0.0
  %2052 = vmatpush1.msra.mxu0 0.0
  %2053 = vmatprep.subr.mxu0 0.0
  %2054 = vmatpush1.msra.mxu0 0.0
  %2055 = vmatprep.subr.mxu0 0.0
  %2056 = vmatpush1.msra.mxu0 0.0
  %2057 = vmatprep.mubr.f32.mxu0 0.0
  %2058 = vmatmul.mubr.f32.gmra.mrb[0].mxu0 %v1991
  %v2059 = vpop.f32.mrb[0].mxu0
  %v2060 = vadd.f32 0.0, %v2059
  %v2061 = vpop.f32.mrb[0].mxu0
  %2062 = vdwg.mxu0
  %v2064 = vsel %vm731, %v1982, 0
  %2066 = vmatprep.subr.mxu0 0.0
  %2067 = vmatpush1.msra.mxu0 %v1986
  %2068 = vmatprep.subr.mxu0 0.0
  %2069 = vmatpush1.msra.mxu0 0.0
  %2070 = vmatprep.subr.mxu0 0.0
  %2071 = vmatpush1.msra.mxu0 0.0
  %2072 = vmatprep.subr.mxu0 0.0
  %2073 = vmatpush1.msra.mxu0 0.0
  %2074 = vmatprep.subr.mxu0 0.0
  %2075 = vmatpush1.msra.mxu0 0.0
  %2076 = vmatprep.subr.mxu0 0.0
  %2077 = vmatpush1.msra.mxu0 0.0
  %2078 = vmatprep.subr.mxu0 0.0
  %2079 = vmatpush1.msra.mxu0 0.0
  %2080 = vmatprep.subr.mxu0 0.0
  %2081 = vmatpush1.msra.mxu0 0.0
  %2082 = vmatprep.subr.mxu0 0.0
  %2083 = vmatpush1.msra.mxu0 0.0
  %2084 = vmatprep.subr.mxu0 0.0
  %2085 = vmatpush1.msra.mxu0 0.0
  %2086 = vmatprep.subr.mxu0 0.0
  %2087 = vmatpush1.msra.mxu0 0.0
  %2088 = vmatprep.subr.mxu0 0.0
  %2089 = vmatpush1.msra.mxu0 0.0
  %2090 = vmatprep.subr.mxu0 0.0
  %2091 = vmatpush1.msra.mxu0 0.0
  %2092 = vmatprep.subr.mxu0 0.0
  %2093 = vmatpush1.msra.mxu0 0.0
  %2094 = vmatprep.subr.mxu0 0.0
  %2095 = vmatpush1.msra.mxu0 0.0
  %2096 = vmatprep.subr.mxu0 0.0
  %2097 = vmatpush1.msra.mxu0 0.0
  %2098 = vmatprep.subr.mxu0 0.0
  %2099 = vmatpush1.msra.mxu0 0.0
  %2100 = vmatprep.subr.mxu0 0.0
  %2101 = vmatpush1.msra.mxu0 0.0
  %2102 = vmatprep.subr.mxu0 0.0
  %2103 = vmatpush1.msra.mxu0 0.0
  %2104 = vmatprep.subr.mxu0 0.0
  %2105 = vmatpush1.msra.mxu0 0.0
  %2106 = vmatprep.subr.mxu0 0.0
  %2107 = vmatpush1.msra.mxu0 0.0
  %2108 = vmatprep.subr.mxu0 0.0
  %2109 = vmatpush1.msra.mxu0 0.0
  %2110 = vmatprep.subr.mxu0 0.0
  %2111 = vmatpush1.msra.mxu0 0.0
  %2112 = vmatprep.subr.mxu0 0.0
  %2113 = vmatpush1.msra.mxu0 0.0
  %2114 = vmatprep.subr.mxu0 0.0
  %2115 = vmatpush1.msra.mxu0 0.0
  %2116 = vmatprep.subr.mxu0 0.0
  %2117 = vmatpush1.msra.mxu0 0.0
  %2118 = vmatprep.subr.mxu0 0.0
  %2119 = vmatpush1.msra.mxu0 0.0
  %2120 = vmatprep.subr.mxu0 0.0
  %2121 = vmatpush1.msra.mxu0 0.0
  %2122 = vmatprep.subr.mxu0 0.0
  %2123 = vmatpush1.msra.mxu0 0.0
  %2124 = vmatprep.subr.mxu0 0.0
  %2125 = vmatpush1.msra.mxu0 0.0
  %2126 = vmatprep.subr.mxu0 0.0
  %2127 = vmatpush1.msra.mxu0 0.0
  %2128 = vmatprep.subr.mxu0 0.0
  %2129 = vmatpush1.msra.mxu0 0.0
  %2130 = vmatprep.mubr.f32.mxu0 0.0
  %2131 = vmatmul.mubr.f32.gmra.mrb[0].mxu0 %v2064
  %v2132 = vpop.f32.mrb[0].mxu0
  %v2133 = vadd.f32 %v2060, %v2132
  %v2134 = vpop.f32.mrb[0].mxu0
  %2135 = vdwg.mxu0
  %v2137 = vsel %vm731, %v1984, 0
  %2139 = vmatprep.subr.mxu0 0.0
  %2140 = vmatpush1.msra.mxu0 %v1988
  %2141 = vmatprep.subr.mxu0 0.0
  %2142 = vmatpush1.msra.mxu0 0.0
  %2143 = vmatprep.subr.mxu0 0.0
  %2144 = vmatpush1.msra.mxu0 0.0
  %2145 = vmatprep.subr.mxu0 0.0
  %2146 = vmatpush1.msra.mxu0 0.0
  %2147 = vmatprep.subr.mxu0 0.0
  %2148 = vmatpush1.msra.mxu0 0.0
  %2149 = vmatprep.subr.mxu0 0.0
  %2150 = vmatpush1.msra.mxu0 0.0
  %2151 = vmatprep.subr.mxu0 0.0
  %2152 = vmatpush1.msra.mxu0 0.0
  %2153 = vmatprep.subr.mxu0 0.0
  %2154 = vmatpush1.msra.mxu0 0.0
  %2155 = vmatprep.subr.mxu0 0.0
  %2156 = vmatpush1.msra.mxu0 0.0
  %2157 = vmatprep.subr.mxu0 0.0
  %2158 = vmatpush1.msra.mxu0 0.0
  %2159 = vmatprep.subr.mxu0 0.0
  %2160 = vmatpush1.msra.mxu0 0.0
  %2161 = vmatprep.subr.mxu0 0.0
  %2162 = vmatpush1.msra.mxu0 0.0
  %2163 = vmatprep.subr.mxu0 0.0
  %2164 = vmatpush1.msra.mxu0 0.0
  %2165 = vmatprep.subr.mxu0 0.0
  %2166 = vmatpush1.msra.mxu0 0.0
  %2167 = vmatprep.subr.mxu0 0.0
  %2168 = vmatpush1.msra.mxu0 0.0
  %2169 = vmatprep.subr.mxu0 0.0
  %2170 = vmatpush1.msra.mxu0 0.0
  %2171 = vmatprep.subr.mxu0 0.0
  %2172 = vmatpush1.msra.mxu0 0.0
  %2173 = vmatprep.subr.mxu0 0.0
  %2174 = vmatpush1.msra.mxu0 0.0
  %2175 = vmatprep.subr.mxu0 0.0
  %2176 = vmatpush1.msra.mxu0 0.0
  %2177 = vmatprep.subr.mxu0 0.0
  %2178 = vmatpush1.msra.mxu0 0.0
  %2179 = vmatprep.subr.mxu0 0.0
  %2180 = vmatpush1.msra.mxu0 0.0
  %2181 = vmatprep.subr.mxu0 0.0
  %2182 = vmatpush1.msra.mxu0 0.0
  %2183 = vmatprep.subr.mxu0 0.0
  %2184 = vmatpush1.msra.mxu0 0.0
  %2185 = vmatprep.subr.mxu0 0.0
  %2186 = vmatpush1.msra.mxu0 0.0
  %2187 = vmatprep.subr.mxu0 0.0
  %2188 = vmatpush1.msra.mxu0 0.0
  %2189 = vmatprep.subr.mxu0 0.0
  %2190 = vmatpush1.msra.mxu0 0.0
  %2191 = vmatprep.subr.mxu0 0.0
  %2192 = vmatpush1.msra.mxu0 0.0
  %2193 = vmatprep.subr.mxu0 0.0
  %2194 = vmatpush1.msra.mxu0 0.0
  %2195 = vmatprep.subr.mxu0 0.0
  %2196 = vmatpush1.msra.mxu0 0.0
  %2197 = vmatprep.subr.mxu0 0.0
  %2198 = vmatpush1.msra.mxu0 0.0
  %2199 = vmatprep.subr.mxu0 0.0
  %2200 = vmatpush1.msra.mxu0 0.0
  %2201 = vmatprep.subr.mxu0 0.0
  %2202 = vmatpush1.msra.mxu0 0.0
  %2203 = vmatprep.mubr.f32.mxu0 0.0
  %2204 = vmatmul.mubr.f32.gmra.mrb[0].mxu0 %v2137
  %v2205 = vpop.f32.mrb[0].mxu0
  %v2206 = vadd.f32 0.0, %v2205
  %v2207 = vpop.f32.mrb[0].mxu0
  %2208 = vdwg.mxu0
  %v2209 = vadd.f32 %v2133, %v2206
  %v2211 = vsel %vm731, %v1985, 0
  %2213 = vmatprep.subr.mxu0 0.0
  %2214 = vmatpush1.msra.mxu0 %v1989
  %2215 = vmatprep.subr.mxu0 0.0
  %2216 = vmatpush1.msra.mxu0 0.0
  %2217 = vmatprep.subr.mxu0 0.0
  %2218 = vmatpush1.msra.mxu0 0.0
  %2219 = vmatprep.subr.mxu0 0.0
  %2220 = vmatpush1.msra.mxu0 0.0
  %2221 = vmatprep.subr.mxu0 0.0
  %2222 = vmatpush1.msra.mxu0 0.0
  %2223 = vmatprep.subr.mxu0 0.0
  %2224 = vmatpush1.msra.mxu0 0.0
  %2225 = vmatprep.subr.mxu0 0.0
  %2226 = vmatpush1.msra.mxu0 0.0
  %2227 = vmatprep.subr.mxu0 0.0
  %2228 = vmatpush1.msra.mxu0 0.0
  %2229 = vmatprep.subr.mxu0 0.0
  %2230 = vmatpush1.msra.mxu0 0.0
  %2231 = vmatprep.subr.mxu0 0.0
  %2232 = vmatpush1.msra.mxu0 0.0
  %2233 = vmatprep.subr.mxu0 0.0
  %2234 = vmatpush1.msra.mxu0 0.0
  %2235 = vmatprep.subr.mxu0 0.0
  %2236 = vmatpush1.msra.mxu0 0.0
  %2237 = vmatprep.subr.mxu0 0.0
  %2238 = vmatpush1.msra.mxu0 0.0
  %2239 = vmatprep.subr.mxu0 0.0
  %2240 = vmatpush1.msra.mxu0 0.0
  %2241 = vmatprep.subr.mxu0 0.0
  %2242 = vmatpush1.msra.mxu0 0.0
  %2243 = vmatprep.subr.mxu0 0.0
  %2244 = vmatpush1.msra.mxu0 0.0
  %2245 = vmatprep.subr.mxu0 0.0
  %2246 = vmatpush1.msra.mxu0 0.0
  %2247 = vmatprep.subr.mxu0 0.0
  %2248 = vmatpush1.msra.mxu0 0.0
  %2249 = vmatprep.subr.mxu0 0.0
  %2250 = vmatpush1.msra.mxu0 0.0
  %2251 = vmatprep.subr.mxu0 0.0
  %2252 = vmatpush1.msra.mxu0 0.0
  %2253 = vmatprep.subr.mxu0 0.0
  %2254 = vmatpush1.msra.mxu0 0.0
  %2255 = vmatprep.subr.mxu0 0.0
  %2256 = vmatpush1.msra.mxu0 0.0
  %2257 = vmatprep.subr.mxu0 0.0
  %2258 = vmatpush1.msra.mxu0 0.0
  %2259 = vmatprep.subr.mxu0 0.0
  %2260 = vmatpush1.msra.mxu0 0.0
  %2261 = vmatprep.subr.mxu0 0.0
  %2262 = vmatpush1.msra.mxu0 0.0
  %2263 = vmatprep.subr.mxu0 0.0
  %2264 = vmatpush1.msra.mxu0 0.0
  %2265 = vmatprep.subr.mxu0 0.0
  %2266 = vmatpush1.msra.mxu0 0.0
  %2267 = vmatprep.subr.mxu0 0.0
  %2268 = vmatpush1.msra.mxu0 0.0
  %2269 = vmatprep.subr.mxu0 0.0
  %2270 = vmatpush1.msra.mxu0 0.0
  %2271 = vmatprep.subr.mxu0 0.0
  %2272 = vmatpush1.msra.mxu0 0.0
  %2273 = vmatprep.subr.mxu0 0.0
  %2274 = vmatpush1.msra.mxu0 0.0
  %2275 = vmatprep.subr.mxu0 0.0
  %2276 = vmatpush1.msra.mxu0 0.0
  %2277 = vmatprep.mubr.f32.mxu0 0.0
  %2278 = vmatmul.mubr.f32.gmra.mrb[0].mxu0 %v2211
  %v2279 = vpop.f32.mrb[0].mxu0
  %v2280 = vadd.f32 0.0, %v2279
  %v2281 = vpop.f32.mrb[0].mxu0
  %2282 = vdwg.mxu0
  %v2283 = vadd.f32 %v2209, %v2280
  %v2284 = vld [vmem:[%s2 + $0x88] sm:$0x1]
  %v2285 = vlaneseq
  %v2286 = vshrl.u32 %v2285, 7
  %v2287 = vsub.s32 0, %v2286
  %v2288 = vrot.slane %v2284, %v2287
  %v2289 = vadd.f32 %v2283, %v2288
  %v2290 = vmax.f32 %v2289, 0.0
  %v2291 = vld [vmem:[%s2 + $0x90] sm:$0xff]
  %v2292 = vld [vmem:[%s1] sm:$0xff]
  %v2293 = vld [vmem:[%s2 + $0x98] sm:$0xf]
  %vm2294 = vcmask 31744
  %v2296 = vsel %vm2294, %v2292, 0
  %vm2298 = vcmask 1043456
  %v2300 = vsel %vm2298, %v2293, 0
  %2302 = vmatprep.subr.mxu0 0.0
  %2303 = vmatpush1.msra.mxu0 %v2300
  %2304 = vmatprep.subr.mxu0 0.0
  %2305 = vmatpush1.msra.mxu0 0.0
  %2306 = vmatprep.subr.mxu0 0.0
  %2307 = vmatpush1.msra.mxu0 0.0
  %2308 = vmatprep.subr.mxu0 0.0
  %2309 = vmatpush1.msra.mxu0 0.0
  %2310 = vmatprep.subr.mxu0 0.0
  %2311 = vmatpush1.msra.mxu0 0.0
  %2312 = vmatprep.subr.mxu0 0.0
  %2313 = vmatpush1.msra.mxu0 0.0
  %2314 = vmatprep.subr.mxu0 0.0
  %2315 = vmatpush1.msra.mxu0 0.0
  %2316 = vmatprep.subr.mxu0 0.0
  %2317 = vmatpush1.msra.mxu0 0.0
  %2318 = vmatprep.subr.mxu0 0.0
  %2319 = vmatpush1.msra.mxu0 0.0
  %2320 = vmatprep.subr.mxu0 0.0
  %2321 = vmatpush1.msra.mxu0 0.0
  %2322 = vmatprep.subr.mxu0 0.0
  %2323 = vmatpush1.msra.mxu0 0.0
  %2324 = vmatprep.subr.mxu0 0.0
  %2325 = vmatpush1.msra.mxu0 0.0
  %2326 = vmatprep.subr.mxu0 0.0
  %2327 = vmatpush1.msra.mxu0 0.0
  %2328 = vmatprep.subr.mxu0 0.0
  %2329 = vmatpush1.msra.mxu0 0.0
  %2330 = vmatprep.subr.mxu0 0.0
  %2331 = vmatpush1.msra.mxu0 0.0
  %2332 = vmatprep.subr.mxu0 0.0
  %2333 = vmatpush1.msra.mxu0 0.0
  %2334 = vmatprep.subr.mxu0 0.0
  %2335 = vmatpush1.msra.mxu0 0.0
  %2336 = vmatprep.subr.mxu0 0.0
  %2337 = vmatpush1.msra.mxu0 0.0
  %2338 = vmatprep.subr.mxu0 0.0
  %2339 = vmatpush1.msra.mxu0 0.0
  %2340 = vmatprep.subr.mxu0 0.0
  %2341 = vmatpush1.msra.mxu0 0.0
  %2342 = vmatprep.subr.mxu0 0.0
  %2343 = vmatpush1.msra.mxu0 0.0
  %2344 = vmatprep.subr.mxu0 0.0
  %2345 = vmatpush1.msra.mxu0 0.0
  %2346 = vmatprep.subr.mxu0 0.0
  %2347 = vmatpush1.msra.mxu0 0.0
  %2348 = vmatprep.subr.mxu0 0.0
  %2349 = vmatpush1.msra.mxu0 0.0
  %2350 = vmatprep.subr.mxu0 0.0
  %2351 = vmatpush1.msra.mxu0 0.0
  %2352 = vmatprep.subr.mxu0 0.0
  %2353 = vmatpush1.msra.mxu0 0.0
  %2354 = vmatprep.subr.mxu0 0.0
  %2355 = vmatpush1.msra.mxu0 0.0
  %2356 = vmatprep.subr.mxu0 0.0
  %2357 = vmatpush1.msra.mxu0 0.0
  %2358 = vmatprep.subr.mxu0 0.0
  %2359 = vmatpush1.msra.mxu0 0.0
  %2360 = vmatprep.subr.mxu0 0.0
  %2361 = vmatpush1.msra.mxu0 0.0
  %2362 = vmatprep.subr.mxu0 0.0
  %2363 = vmatpush1.msra.mxu0 0.0
  %2364 = vmatprep.subr.mxu0 0.0
  %2365 = vmatpush1.msra.mxu0 0.0
  %2366 = vmatprep.mubr.f32.mxu0 0.0
  %2367 = vmatmul.mubr.f32.gmra.mrb[0].mxu0 %v2296
  %v2368 = vpop.f32.mrb[0].mxu0
  %v2369 = vadd.f32 0.0, %v2368
  %v2370 = vpop.f32.mrb[0].mxu0
  %2371 = vdwg.mxu0
  %v2373 = vsel %vm731, %v2290, 0
  %2375 = vmatprep.subr.mxu0 0.0
  %2376 = vmatpush1.msra.mxu0 %v2291
  %2377 = vmatprep.subr.mxu0 0.0
  %2378 = vmatpush1.msra.mxu0 0.0
  %2379 = vmatprep.subr.mxu0 0.0
  %2380 = vmatpush1.msra.mxu0 0.0
  %2381 = vmatprep.subr.mxu0 0.0
  %2382 = vmatpush1.msra.mxu0 0.0
  %2383 = vmatprep.subr.mxu0 0.0
  %2384 = vmatpush1.msra.mxu0 0.0
  %2385 = vmatprep.subr.mxu0 0.0
  %2386 = vmatpush1.msra.mxu0 0.0
  %2387 = vmatprep.subr.mxu0 0.0
  %2388 = vmatpush1.msra.mxu0 0.0
  %2389 = vmatprep.subr.mxu0 0.0
  %2390 = vmatpush1.msra.mxu0 0.0
  %2391 = vmatprep.subr.mxu0 0.0
  %2392 = vmatpush1.msra.mxu0 0.0
  %2393 = vmatprep.subr.mxu0 0.0
  %2394 = vmatpush1.msra.mxu0 0.0
  %2395 = vmatprep.subr.mxu0 0.0
  %2396 = vmatpush1.msra.mxu0 0.0
  %2397 = vmatprep.subr.mxu0 0.0
  %2398 = vmatpush1.msra.mxu0 0.0
  %2399 = vmatprep.subr.mxu0 0.0
  %2400 = vmatpush1.msra.mxu0 0.0
  %2401 = vmatprep.subr.mxu0 0.0
  %2402 = vmatpush1.msra.mxu0 0.0
  %2403 = vmatprep.subr.mxu0 0.0
  %2404 = vmatpush1.msra.mxu0 0.0
  %2405 = vmatprep.subr.mxu0 0.0
  %2406 = vmatpush1.msra.mxu0 0.0
  %2407 = vmatprep.subr.mxu0 0.0
  %2408 = vmatpush1.msra.mxu0 0.0
  %2409 = vmatprep.subr.mxu0 0.0
  %2410 = vmatpush1.msra.mxu0 0.0
  %2411 = vmatprep.subr.mxu0 0.0
  %2412 = vmatpush1.msra.mxu0 0.0
  %2413 = vmatprep.subr.mxu0 0.0
  %2414 = vmatpush1.msra.mxu0 0.0
  %2415 = vmatprep.subr.mxu0 0.0
  %2416 = vmatpush1.msra.mxu0 0.0
  %2417 = vmatprep.subr.mxu0 0.0
  %2418 = vmatpush1.msra.mxu0 0.0
  %2419 = vmatprep.subr.mxu0 0.0
  %2420 = vmatpush1.msra.mxu0 0.0
  %2421 = vmatprep.subr.mxu0 0.0
  %2422 = vmatpush1.msra.mxu0 0.0
  %2423 = vmatprep.subr.mxu0 0.0
  %2424 = vmatpush1.msra.mxu0 0.0
  %2425 = vmatprep.subr.mxu0 0.0
  %2426 = vmatpush1.msra.mxu0 0.0
  %2427 = vmatprep.subr.mxu0 0.0
  %2428 = vmatpush1.msra.mxu0 0.0
  %2429 = vmatprep.subr.mxu0 0.0
  %2430 = vmatpush1.msra.mxu0 0.0
  %2431 = vmatprep.subr.mxu0 0.0
  %2432 = vmatpush1.msra.mxu0 0.0
  %2433 = vmatprep.subr.mxu0 0.0
  %2434 = vmatpush1.msra.mxu0 0.0
  %2435 = vmatprep.subr.mxu0 0.0
  %2436 = vmatpush1.msra.mxu0 0.0
  %2437 = vmatprep.subr.mxu0 0.0
  %2438 = vmatpush1.msra.mxu0 0.0
  %2439 = vmatprep.mubr.f32.mxu0 0.0
  %2440 = vmatmul.mubr.f32.gmra.mrb[0].mxu0 %v2373
  %v2441 = vpop.f32.mrb[0].mxu0
  %v2442 = vadd.f32 %v2369, %v2441
  %v2443 = vpop.f32.mrb[0].mxu0
  %2444 = vdwg.mxu0
  %v2445 = vld [vmem:[%s2 + $0xa0] sm:$0x1]
  %v2446 = vlaneseq
  %v2447 = vshrl.u32 %v2446, 7
  %v2448 = vsub.s32 0, %v2447
  %v2449 = vrot.slane %v2445, %v2448
  %v2450 = vadd.f32 %v2442, %v2449
  %v2451 = vmax.f32 %v2450, 0.0
  %v2452 = vld [vmem:[%s2 + $0xa8] sm:$0xff]
  %v2453 = vld [vmem:[%s2 + $0xb0] sm:$0xff]
  %v2454 = vld [vmem:[%s2 + $0xb8] sm:$0xff]
  %v2455 = vld [vmem:[%s2 + $0xc0] sm:$0xff]
  %v2456 = vld [vmem:[%s2 + $0xc8] sm:$0xff]
  %v2457 = vld [vmem:[%s2 + $0xd0] sm:$0xff]
  %v2458 = vld [vmem:[%s2 + $0xd8] sm:$0xff]
  %v2459 = vld [vmem:[%s2 + $0xe0] sm:$0xff]
  %v2460 = vld [vmem:[%s2 + $0xe8] sm:$0x1]
  %v2461 = vlaneseq
  %v2462 = vshrl.u32 %v2461, 7
  %v2463 = vsub.s32 0, %v2462
  %v2464 = vrot.slane %v2460, %v2463
  %vm2465 = vcmask 523264
  %v2467 = vsel %vm2465, %v2451, 0
  %2469 = vmatprep.subr.mxu0 0.0
  %2470 = vmatpush1.msra.mxu0 %v2452
  %2471 = vmatprep.subr.mxu0 0.0
  %2472 = vmatpush1.msra.mxu0 %v2453
  %2473 = vmatprep.subr.mxu0 0.0
  %2474 = vmatpush1.msra.mxu0 %v2454
  %2475 = vmatprep.subr.mxu0 0.0
  %2476 = vmatpush1.msra.mxu0 %v2455
  %2477 = vmatprep.subr.mxu0 0.0
  %2478 = vmatpush1.msra.mxu0 %v2456
  %2479 = vmatprep.subr.mxu0 0.0
  %2480 = vmatpush1.msra.mxu0 %v2457
  %2481 = vmatprep.subr.mxu0 0.0
  %2482 = vmatpush1.msra.mxu0 %v2458
  %2483 = vmatprep.subr.mxu0 0.0
  %2484 = vmatpush1.msra.mxu0 %v2459
  %2485 = vmatprep.subr.mxu0 0.0
  %2486 = vmatpush1.msra.mxu0 0.0
  %2487 = vmatprep.subr.mxu0 0.0
  %2488 = vmatpush1.msra.mxu0 0.0
  %2489 = vmatprep.subr.mxu0 0.0
  %2490 = vmatpush1.msra.mxu0 0.0
  %2491 = vmatprep.subr.mxu0 0.0
  %2492 = vmatpush1.msra.mxu0 0.0
  %2493 = vmatprep.subr.mxu0 0.0
  %2494 = vmatpush1.msra.mxu0 0.0
  %2495 = vmatprep.subr.mxu0 0.0
  %2496 = vmatpush1.msra.mxu0 0.0
  %2497 = vmatprep.subr.mxu0 0.0
  %2498 = vmatpush1.msra.mxu0 0.0
  %2499 = vmatprep.subr.mxu0 0.0
  %2500 = vmatpush1.msra.mxu0 0.0
  %2501 = vmatprep.subr.mxu0 0.0
  %2502 = vmatpush1.msra.mxu0 0.0
  %2503 = vmatprep.subr.mxu0 0.0
  %2504 = vmatpush1.msra.mxu0 0.0
  %2505 = vmatprep.subr.mxu0 0.0
  %2506 = vmatpush1.msra.mxu0 0.0
  %2507 = vmatprep.subr.mxu0 0.0
  %2508 = vmatpush1.msra.mxu0 0.0
  %2509 = vmatprep.subr.mxu0 0.0
  %2510 = vmatpush1.msra.mxu0 0.0
  %2511 = vmatprep.subr.mxu0 0.0
  %2512 = vmatpush1.msra.mxu0 0.0
  %2513 = vmatprep.subr.mxu0 0.0
  %2514 = vmatpush1.msra.mxu0 0.0
  %2515 = vmatprep.subr.mxu0 0.0
  %2516 = vmatpush1.msra.mxu0 0.0
  %2517 = vmatprep.subr.mxu0 0.0
  %2518 = vmatpush1.msra.mxu0 0.0
  %2519 = vmatprep.subr.mxu0 0.0
  %2520 = vmatpush1.msra.mxu0 0.0
  %2521 = vmatprep.subr.mxu0 0.0
  %2522 = vmatpush1.msra.mxu0 0.0
  %2523 = vmatprep.subr.mxu0 0.0
  %2524 = vmatpush1.msra.mxu0 0.0
  %2525 = vmatprep.subr.mxu0 0.0
  %2526 = vmatpush1.msra.mxu0 0.0
  %2527 = vmatprep.subr.mxu0 0.0
  %2528 = vmatpush1.msra.mxu0 0.0
  %2529 = vmatprep.subr.mxu0 0.0
  %2530 = vmatpush1.msra.mxu0 0.0
  %2531 = vmatprep.subr.mxu0 0.0
  %2532 = vmatpush1.msra.mxu0 0.0
  %2533 = vmatprep.mubr.f32.mxu0 0.0
  %2534 = vmatmul.mubr.f32.gmra.mrb[0].mxu0 %v2467
  %v2535 = vpop.f32.mrb[0].mxu0
  %v2536 = vadd.f32 %v2464, %v2535
  %v2537 = vpop.f32.mrb[0].mxu0
  %2538 = vdwg.mxu0
  %v2539 = vmax.f32 %v2536, 0.0
  %v2540 = vld [vmem:[%s2 + $0xf0] sm:$0xff]
  %v2541 = vld [vmem:[%s2 + $0xf8] sm:$0xff]
  %v2542 = vld [vmem:[%s2 + $0x100] sm:$0xff]
  %v2543 = vld [vmem:[%s2 + $0x108] sm:$0xff]
  %v2544 = vld [vmem:[%s2 + $0x110] sm:$0x1]
  %v2545 = vlaneseq
  %v2546 = vshrl.u32 %v2545, 7
  %v2547 = vsub.s32 0, %v2546
  %v2548 = vrot.slane %v2544, %v2547
  %vm2549 = vcmask 261120
  %v2551 = vsel %vm2549, %v2539, 0
  %2553 = vmatprep.subr.mxu0 0.0
  %2554 = vmatpush1.msra.mxu0 %v2540
  %2555 = vmatprep.subr.mxu0 0.0
  %2556 = vmatpush1.msra.mxu0 %v2541
  %2557 = vmatprep.subr.mxu0 0.0
  %2558 = vmatpush1.msra.mxu0 %v2542
  %2559 = vmatprep.subr.mxu0 0.0
  %2560 = vmatpush1.msra.mxu0 %v2543
  %2561 = vmatprep.subr.mxu0 0.0
  %2562 = vmatpush1.msra.mxu0 0.0
  %2563 = vmatprep.subr.mxu0 0.0
  %2564 = vmatpush1.msra.mxu0 0.0
  %2565 = vmatprep.subr.mxu0 0.0
  %2566 = vmatpush1.msra.mxu0 0.0
  %2567 = vmatprep.subr.mxu0 0.0
  %2568 = vmatpush1.msra.mxu0 0.0
  %2569 = vmatprep.subr.mxu0 0.0
  %2570 = vmatpush1.msra.mxu0 0.0
  %2571 = vmatprep.subr.mxu0 0.0
  %2572 = vmatpush1.msra.mxu0 0.0
  %2573 = vmatprep.subr.mxu0 0.0
  %2574 = vmatpush1.msra.mxu0 0.0
  %2575 = vmatprep.subr.mxu0 0.0
  %2576 = vmatpush1.msra.mxu0 0.0
  %2577 = vmatprep.subr.mxu0 0.0
  %2578 = vmatpush1.msra.mxu0 0.0
  %2579 = vmatprep.subr.mxu0 0.0
  %2580 = vmatpush1.msra.mxu0 0.0
  %2581 = vmatprep.subr.mxu0 0.0
  %2582 = vmatpush1.msra.mxu0 0.0
  %2583 = vmatprep.subr.mxu0 0.0
  %2584 = vmatpush1.msra.mxu0 0.0
  %2585 = vmatprep.subr.mxu0 0.0
  %2586 = vmatpush1.msra.mxu0 0.0
  %2587 = vmatprep.subr.mxu0 0.0
  %2588 = vmatpush1.msra.mxu0 0.0
  %2589 = vmatprep.subr.mxu0 0.0
  %2590 = vmatpush1.msra.mxu0 0.0
  %2591 = vmatprep.subr.mxu0 0.0
  %2592 = vmatpush1.msra.mxu0 0.0
  %2593 = vmatprep.subr.mxu0 0.0
  %2594 = vmatpush1.msra.mxu0 0.0
  %2595 = vmatprep.subr.mxu0 0.0
  %2596 = vmatpush1.msra.mxu0 0.0
  %2597 = vmatprep.subr.mxu0 0.0
  %2598 = vmatpush1.msra.mxu0 0.0
  %2599 = vmatprep.subr.mxu0 0.0
  %2600 = vmatpush1.msra.mxu0 0.0
  %2601 = vmatprep.subr.mxu0 0.0
  %2602 = vmatpush1.msra.mxu0 0.0
  %2603 = vmatprep.subr.mxu0 0.0
  %2604 = vmatpush1.msra.mxu0 0.0
  %2605 = vmatprep.subr.mxu0 0.0
  %2606 = vmatpush1.msra.mxu0 0.0
  %2607 = vmatprep.subr.mxu0 0.0
  %2608 = vmatpush1.msra.mxu0 0.0
  %2609 = vmatprep.subr.mxu0 0.0
  %2610 = vmatpush1.msra.mxu0 0.0
  %2611 = vmatprep.subr.mxu0 0.0
  %2612 = vmatpush1.msra.mxu0 0.0
  %2613 = vmatprep.subr.mxu0 0.0
  %2614 = vmatpush1.msra.mxu0 0.0
  %2615 = vmatprep.subr.mxu0 0.0
  %2616 = vmatpush1.msra.mxu0 0.0
  %2617 = vmatprep.mubr.f32.mxu0 0.0
  %2618 = vmatmul.mubr.f32.gmra.mrb[0].mxu0 %v2551
  %v2619 = vpop.f32.mrb[0].mxu0
  %v2620 = vadd.f32 %v2548, %v2619
  %v2621 = vpop.f32.mrb[0].mxu0
  %2622 = vdwg.mxu0
  %v2623 = vtanh.pop %v2620
  %v2624 = vadd.f32 %v2623, 1.0
  %v2625 = vmul.f32 %v2624, 6.0
  %v2626 = vadd.f32 %v2625, -10.0
  %v2627 = vlaneseq
  %v2628 = vand.u32 %v2627, 127
  %vm2629 = vcmp.lt.s32.totalorder %v2628, 2
  %v2630 = vmul.f32 %v2626, 1.442695
  %v2631 = vpow.pop %v2630
  %v2632 = vsel %vm2629, %v2620, %v2631
  %2633 = vst.msk [vmem:[%s3] sm:$0xff] %vm2294, %v2632
  // Predicated region
  $region14: #{_lambda_.1} parent=0 // pred_check
    _
  $region15: #{_lambda_.1} parent=0 // pred_check_branch
    %2635 = sbr.rel (0) target = $region17
  $region16: #{_lambda_.1} parent=0 // pred_region
    _
  $region17: #{_lambda_.1} parent=0 // pred_fallthru
    _
  // Predicated region
  $region18: #{_lambda_.1} parent=0 // pred_check
    _
  $region19: #{_lambda_.1} parent=0 // pred_check_branch
    %2637 = sbr.rel (0) target = $region21
  $region20: #{_lambda_.1} parent=0 // pred_region
    _
  $region21: #{_lambda_.1} parent=0 // pred_fallthru
    _

</llo_original>
